<compile_context>
chip_gen: v6e
topology: v6e:2x2x1
jax: 0.10.0
libtpu: 0.0.40
codegen_flags: <defaults>
</compile_context>

<pallas_src>
import functools

import jax
import jax.numpy as jnp
from jax.experimental import pallas as pl
from jax.experimental.pallas import tpu as pltpu


def _round_up(x, m):
    return ((x + m - 1) // m) * m


def _nnconv_kernel(h_ref, e_ref, src_ref, dst_ref,
                   w1_ref, b1_ref, w2f_ref, root_ref, bias_ref,
                   out_ref, acc_ref, scaled_ref,
                   *, cin, hidden_p):
    core = pl.program_id(0)     # "parallel" axis (megacore on v7x)
    step = pl.program_id(1)     # "arbitrary" edge-tile axis (accumulation)

    @pl.when(step == 0)
    def _init():
        acc_ref[...] = jnp.zeros_like(acc_ref)

    h = h_ref[...]                          # [Np, Cin] f32 (resident)
    e = e_ref[...]                          # [Te, De]  bf16 (edge tile)
    src = src_ref[...]                      # [1, Te] int32
    dst = dst_ref[...]                      # [1, Te] int32
    n_pad = h.shape[0]
    te = src.shape[1]

    # --- edge MLP hidden layer: Linear -> ReLU.  Column `hidden` of w1/b1 is
    #     the baked-in constant-1 unit that folds the second-layer bias b2
    #     into w2_fused; extra padded columns are exactly zero.
    hdn = jnp.maximum(
        jnp.dot(e, w1_ref[...], preferred_element_type=jnp.float32) + b1_ref[...],
        0.0)                                # [Te, Hp] f32

    # --- one-hot gather/scatter masks built directly in [Np, Te] layout
    #     (no XLU transpose); exactly representable in bf16.
    node_iota = jax.lax.broadcasted_iota(jnp.int32, (n_pad, te), 0)
    src_oh = (node_iota == src).astype(jnp.bfloat16)     # [Np, Te]
    dst_oh = (node_iota == dst).astype(jnp.bfloat16)     # [Np, Te]

    # --- gather source node features: contract the node axis (axis 0 of both)
    h_src = jax.lax.dot_general(
        src_oh, h.astype(jnp.bfloat16),
        dimension_numbers=(((0,), (0,)), ((), ())),
        preferred_element_type=jnp.float32)              # [Te, Cin] f32

    # --- fused message matmul.  Stage scaled[e, i*Hp + h] = h_src[e,i]*hdn[e,h]
    #     in a VMEM scratch (bf16), then a single K = Cin*Hp MXU matmul
    #     replaces the per-Cin K=H loop and the K=Cin bias matmul.
    for i in range(cin):
        scaled_ref[:, i * hidden_p:(i + 1) * hidden_p] = (
            h_src[:, i:i + 1] * hdn).astype(jnp.bfloat16)
    m = jnp.dot(scaled_ref[...], w2f_ref[...],
                preferred_element_type=jnp.float32)      # [Te, Cout_p] f32

    # --- scatter-sum into destination nodes (resident f32 accumulator).
    #     Padding edges use node index n_pad -> both one-hot columns are zero.
    acc_ref[...] += jnp.dot(dst_oh, m.astype(jnp.bfloat16),
                            preferred_element_type=jnp.float32)

    @pl.when(step == pl.num_programs(1) - 1)
    def _finalize():
        # root/bias applied exactly once (core-0 partial); per-core partials
        # are summed by the wrapper.
        add_root = (core == 0).astype(jnp.float32)
        res = acc_ref[...] + add_root * (
            jnp.dot(h, root_ref[...], preferred_element_type=jnp.float32)
            + bias_ref[...])
        out_ref[...] = res.astype(out_ref.dtype)


def nnconv_forward(h, e, src, dst, params, *, edge_tile=1024, num_cores=1,
                   vmem_limit_bytes=48 * 1024 * 1024):
    """NNConvLayer.forward with aggr='sum', root_weight=True, bias=True."""
    n_nodes, cin = h.shape
    n_edges, edge_dim = e.shape
    hidden = params["w1"].shape[1]
    cout = params["root"].shape[1]

    # ---- lane/sublane-friendly padding ----
    cout_p = _round_up(cout, 128)          # lane-dense output / w2f columns
    n_pad = _round_up(n_nodes, 16)         # bf16 sublane packing
    # hidden_p: hidden + 1 (constant-1 unit folds b2), padded so the fused
    # contraction K = cin*hidden_p is a multiple of 128 when cin divides evenly.
    k_raw = cin * (hidden + 1)
    k_p = _round_up(k_raw, 128)
    hidden_p = k_p // cin if k_p % cin == 0 else hidden + 1
    k_fused = cin * hidden_p

    # edge tile: multiple of 128 regardless of the user-supplied value
    te = _round_up(min(max(edge_tile, 1), max(n_edges, 1)), 128)
    e_pad = _round_up(max(n_edges, 1), te * num_cores)
    tiles_per_core = e_pad // (te * num_cores)

    # ---- padded / fused host-side operands ----
    h_p = jnp.zeros((n_pad, cin), jnp.float32).at[:n_nodes].set(
        h.astype(jnp.float32))
    e_p = jnp.zeros((e_pad, edge_dim), jnp.bfloat16).at[:n_edges].set(
        e.astype(jnp.bfloat16))
    pad_idx = jnp.full((e_pad,), n_pad, jnp.int32)        # never matches a node
    src_p = pad_idx.at[:n_edges].set(src.astype(jnp.int32)).reshape(1, e_pad)
    dst_p = pad_idx.at[:n_edges].set(dst.astype(jnp.int32)).reshape(1, e_pad)

    # edge-net layer 1 with an extra constant-1 hidden unit at column `hidden`
    w1_p = jnp.zeros((edge_dim, hidden_p), jnp.bfloat16).at[:, :hidden].set(
        params["w1"].astype(jnp.bfloat16))
    b1_p = (jnp.zeros((1, hidden_p), jnp.float32)
            .at[0, :hidden].set(params["b1"].astype(jnp.float32))
            .at[0, hidden].set(1.0))

    # fused layer-2 weights: w2f[(i, h), o] = w2[h, i, o]; row (i, hidden)
    # holds b2[i, o]; padded rows/columns are zero.
    w2_3d = params["w2"].reshape(hidden, cin, cout)
    w2f = jnp.zeros((cin, hidden_p, cout_p), jnp.float32)
    w2f = w2f.at[:, :hidden, :cout].set(jnp.transpose(w2_3d, (1, 0, 2)))
    w2f = w2f.at[:, hidden, :cout].set(params["b2"].reshape(cin, cout))
    w2f = w2f.reshape(k_fused, cout_p).astype(jnp.bfloat16)

    root_p = jnp.zeros((cin, cout_p), jnp.float32).at[:, :cout].set(params["root"])
    bias_p = jnp.zeros((1, cout_p), jnp.float32).at[0, :cout].set(params["bias"])

    kernel = functools.partial(_nnconv_kernel, cin=cin, hidden_p=hidden_p)

    flops = int(2 * e_pad * (edge_dim * hidden_p       # edge MLP
                             + n_pad * cin             # one-hot gather
                             + k_fused * cout_p        # fused message matmul
                             + n_pad * cout_p)         # one-hot scatter
                + 2 * num_cores * n_pad * cin * cout_p)
    bytes_acc = int(4 * (h_p.size + src_p.size + dst_p.size + b1_p.size
                         + root_p.size + bias_p.size + num_cores * n_pad * cout_p)
                    + 2 * (e_p.size + w1_p.size + w2f.size))

    partials = pl.pallas_call(
        kernel,
        out_shape=jax.ShapeDtypeStruct((num_cores, n_pad, cout_p), jnp.float32),
        grid_spec=pltpu.PrefetchScalarGridSpec(
            num_scalar_prefetch=0,
            grid=(num_cores, tiles_per_core),
            in_specs=[
                pl.BlockSpec((n_pad, cin), lambda c, i: (0, 0)),           # h
                pl.BlockSpec((te, edge_dim),
                             lambda c, i: (c * tiles_per_core + i, 0)),    # e tile
                pl.BlockSpec((1, te),
                             lambda c, i: (0, c * tiles_per_core + i)),    # src
                pl.BlockSpec((1, te),
                             lambda c, i: (0, c * tiles_per_core + i)),    # dst
                pl.BlockSpec((edge_dim, hidden_p), lambda c, i: (0, 0)),   # w1
                pl.BlockSpec((1, hidden_p), lambda c, i: (0, 0)),          # b1
                pl.BlockSpec((k_fused, cout_p), lambda c, i: (0, 0)),      # w2 fused
                pl.BlockSpec((cin, cout_p), lambda c, i: (0, 0)),          # root
                pl.BlockSpec((1, cout_p), lambda c, i: (0, 0)),            # bias
            ],
            out_specs=pl.BlockSpec((None, n_pad, cout_p), lambda c, i: (c, 0, 0)),
            scratch_shapes=[
                pltpu.VMEM((n_pad, cout_p), jnp.float32),   # aggregation acc (f32)
                pltpu.VMEM((te, k_fused), jnp.bfloat16),    # fused-K staging
            ],
        ),
        compiler_params=pltpu.CompilerParams(
            dimension_semantics=("parallel", "arbitrary"),
            vmem_limit_bytes=vmem_limit_bytes,
        ),
        cost_estimate=pl.CostEstimate(flops=flops, transcendentals=0,
                                      bytes_accessed=bytes_acc),
    )(h_p, e_p, src_p, dst_p, w1_p, b1_p, w2f, root_p, bias_p)

    # Sum per-core partial aggregations (root/bias already in partial 0).
    out = partials.sum(axis=0)
    return out[:n_nodes, :cout]


# ---------------------------------------------------------------------------
# deterministic parameter init (matches the module's reset_parameters intent)
# ---------------------------------------------------------------------------
def _xavier_normal(key, shape, gain=1.414):
    fan_in, fan_out = shape
    std = gain * (2.0 / (fan_in + fan_out)) ** 0.5
    return std * jax.random.normal(key, shape, dtype=jnp.float32)


def init_params(key, in_channels, out_channels, edge_dim, hidden):
    k1, k2, k3 = jax.random.split(key, 3)
    return {
        # edge_net: Linear(De, H) -> ReLU -> Linear(H, Cin*Cout)
        "w1": _xavier_normal(k1, (edge_dim, hidden)),
        "b1": jnp.zeros((hidden,), jnp.float32),
        "w2": _xavier_normal(k2, (hidden, in_channels * out_channels)),
        "b2": jnp.zeros((in_channels * out_channels,), jnp.float32),
        # root weight + bias of NNConvLayer
        "root": _xavier_normal(k3, (in_channels, out_channels)),
        "bias": jnp.zeros((out_channels,), jnp.float32),
    }


def _reference(h, e, src, dst, params):
    """Pure-JAX f32 reference of the DGL-style forward (aggr='sum')."""
    n_nodes, cin = h.shape
    cout = params["root"].shape[1]
    hdn = jnp.maximum(e @ params["w1"] + params["b1"], 0.0)
    w = (hdn @ params["w2"] + params["b2"]).reshape(-1, cin, cout)   # [E, Cin, Cout]
    m = jnp.einsum("ei,eio->eo", h[src], w)                          # message
    aggr = jnp.zeros((n_nodes, cout), jnp.float32).at[dst].add(m)    # reduce (sum)
    return aggr + h @ params["root"] + params["bias"]                # apply


if __name__ == "__main__":
    N_NODES, N_EDGES = 20, 300
    IN_CH, OUT_CH, EDGE_DIM, HIDDEN = 4, 8, 6, 32

    key = jax.random.PRNGKey(0)
    kh, ke, ks, kd, kp = jax.random.split(key, 5)

    h = jax.random.normal(kh, (N_NODES, IN_CH), dtype=jnp.float32)
    e = jax.random.normal(ke, (N_EDGES, EDGE_DIM), dtype=jnp.float32)
    src = jax.random.randint(ks, (N_EDGES,), 0, N_NODES, dtype=jnp.int32)
    dst = jax.random.randint(kd, (N_EDGES,), 0, N_NODES, dtype=jnp.int32)

    params = init_params(kp, IN_CH, OUT_CH, EDGE_DIM, HIDDEN)
    ref = _reference(h, e, src, dst, params)

    def check(out):
        out = jax.block_until_ready(out)
        assert out.shape == (N_NODES, OUT_CH)
        # bf16 MXU operands -> small drift vs f32 reference; normalized check.
        err = jnp.max(jnp.abs(out - ref)) / (jnp.max(jnp.abs(ref)) + 1e-6)
        assert float(err) < 5e-2, f"mismatch vs reference (rel err {float(err):.4f})"

    # edge_tile=128 -> several grid steps: exercises init/accumulate/finalize.
    check(nnconv_forward(h, e, src, dst, params, edge_tile=128, num_cores=1))
    # dual-core partial-accumulator path (v7x megacore; sequential on 1-TC chips).
    check(nnconv_forward(h, e, src, dst, params, edge_tile=128, num_cores=2))

    print("KERNEL_OK")
</pallas_src>

<mosaic_0001>
module attributes {stable_mosaic.version = 11 : i64} {
  func.func @_nnconv_kernel(%arg0: i32, %arg1: i32, %arg2: memref<32x4xf32, #tpu.memory_space<vmem>>, %arg3: memref<128x6xbf16, #tpu.memory_space<vmem>>, %arg4: memref<1x128xi32, #tpu.memory_space<vmem>>, %arg5: memref<1x128xi32, #tpu.memory_space<vmem>>, %arg6: memref<6x64xbf16, #tpu.memory_space<vmem>>, %arg7: memref<1x64xf32, #tpu.memory_space<vmem>>, %arg8: memref<256x128xbf16, #tpu.memory_space<vmem>>, %arg9: memref<4x128xf32, #tpu.memory_space<vmem>>, %arg10: memref<1x128xf32, #tpu.memory_space<vmem>>, %arg11: memref<1x32x128xf32, #tpu.memory_space<vmem>>, %arg12: memref<32x128xf32, #tpu.memory_space<vmem>>, %arg13: memref<128x256xbf16, #tpu.memory_space<vmem>>) attributes {dimension_semantics = [#tpu.dimension_semantics<parallel>, #tpu.dimension_semantics<arbitrary>], iteration_bounds = array<i64: 1, 3>, scalar_prefetch = 0 : i64, scratch_operands = 2 : i64, tpu.core_type = #tpu.core_type<tc>, window_params = [{pipeline_mode = #tpu.pipeline_mode<synchronous>, transform_indices = @transform_0, window_bounds = array<i64: 32, 4>}, {transform_indices = @transform_1, window_bounds = array<i64: 128, 6>}, {transform_indices = @transform_2, window_bounds = array<i64: 1, 128>}, {transform_indices = @transform_3, window_bounds = array<i64: 1, 128>}, {pipeline_mode = #tpu.pipeline_mode<synchronous>, transform_indices = @transform_4, window_bounds = array<i64: 6, 64>}, {pipeline_mode = #tpu.pipeline_mode<synchronous>, transform_indices = @transform_5, window_bounds = array<i64: 1, 64>}, {pipeline_mode = #tpu.pipeline_mode<synchronous>, transform_indices = @transform_6, window_bounds = array<i64: 256, 128>}, {pipeline_mode = #tpu.pipeline_mode<synchronous>, transform_indices = @transform_7, window_bounds = array<i64: 4, 128>}, {pipeline_mode = #tpu.pipeline_mode<synchronous>, transform_indices = @transform_8, window_bounds = array<i64: 1, 128>}, {transform_indices = @transform_9, window_bounds = array<i64: 1, 32, 128>}]} {
    %c0_i32 = arith.constant 0 : i32
    %0 = arith.cmpi eq, %arg1, %c0_i32 : i32
    %1 = arith.extui %0 : i1 to i32
    %c0_i32_0 = arith.constant 0 : i32
    %2 = arith.cmpi ne, %1, %c0_i32_0 : i32
    scf.if %2 {
      %cst_30 = arith.constant 0.000000e+00 : f32
      %58 = vector.broadcast %cst_30 : f32 to vector<32x128xf32>
      %c0_31 = arith.constant 0 : index
      %c0_32 = arith.constant 0 : index
      %59 = vector.load %arg12[%c0_31, %c0_32] : memref<32x128xf32, #tpu.memory_space<vmem>>, vector<32x128xf32>
      tpu.vector_store %arg12[%c0_31, %c0_32], %58 {strides = array<i32>} : memref<32x128xf32, #tpu.memory_space<vmem>>, vector<32x128xf32>,
    } else {
    }
    %c0 = arith.constant 0 : index
    %c0_1 = arith.constant 0 : index
    %3 = vector.load %arg2[%c0, %c0_1] : memref<32x4xf32, #tpu.memory_space<vmem>>, vector<32x4xf32>
    %c0_2 = arith.constant 0 : index
    %c0_3 = arith.constant 0 : index
    %4 = vector.load %arg3[%c0_2, %c0_3] : memref<128x6xbf16, #tpu.memory_space<vmem>>, vector<128x6xbf16>
    %c0_4 = arith.constant 0 : index
    %c0_5 = arith.constant 0 : index
    %5 = vector.load %arg4[%c0_4, %c0_5] : memref<1x128xi32, #tpu.memory_space<vmem>>, vector<1x128xi32>
    %c0_6 = arith.constant 0 : index
    %c0_7 = arith.constant 0 : index
    %6 = vector.load %arg5[%c0_6, %c0_7] : memref<1x128xi32, #tpu.memory_space<vmem>>, vector<1x128xi32>
    %c0_8 = arith.constant 0 : index
    %c0_9 = arith.constant 0 : index
    %7 = vector.load %arg6[%c0_8, %c0_9] : memref<6x64xbf16, #tpu.memory_space<vmem>>, vector<6x64xbf16>
    %cst = arith.constant dense<0.000000e+00> : vector<128x64xf32>
    %8 = tpu.matmul %4, %7, %cst {dimension_numbers = #tpu.dot_dimension_numbers<[1], [0], [0], [1], [0, 0, 1, 1], [], []>} : vector<128x6xbf16>, vector<6x64xbf16>, vector<128x64xf32> -> vector<128x64xf32>
    %c0_10 = arith.constant 0 : index
    %c0_11 = arith.constant 0 : index
    %9 = vector.load %arg7[%c0_10, %c0_11] : memref<1x64xf32, #tpu.memory_space<vmem>>, vector<1x64xf32>
    %10 = vector.broadcast %9 : vector<1x64xf32> to vector<128x64xf32>
    %11 = arith.addf %8, %10 : vector<128x64xf32>
    %cst_12 = arith.constant 0.000000e+00 : f32
    %12 = vector.broadcast %cst_12 : f32 to vector<128x64xf32>
    %13 = arith.maximumf %11, %12 : vector<128x64xf32>
    %14 = tpu.iota {dimensions = array<i32: 0>} : vector<32x128xi32>
    %15 = vector.broadcast %5 : vector<1x128xi32> to vector<32x128xi32>
    %16 = arith.cmpi eq, %14, %15 : vector<32x128xi32>
    %17 = arith.extui %16 : vector<32x128xi1> to vector<32x128xi32>
    %18 = arith.sitofp %17 : vector<32x128xi32> to vector<32x128xf32>
    %19 = arith.truncf %18 : vector<32x128xf32> to vector<32x128xbf16>
    %20 = vector.broadcast %6 : vector<1x128xi32> to vector<32x128xi32>
    %21 = arith.cmpi eq, %14, %20 : vector<32x128xi32>
    %22 = arith.extui %21 : vector<32x128xi1> to vector<32x128xi32>
    %23 = arith.sitofp %22 : vector<32x128xi32> to vector<32x128xf32>
    %24 = arith.truncf %23 : vector<32x128xf32> to vector<32x128xbf16>
    %25 = arith.truncf %3 : vector<32x4xf32> to vector<32x4xbf16>
    %cst_13 = arith.constant dense<0.000000e+00> : vector<128x4xf32>
    %26 = tpu.matmul %19, %25, %cst_13 {dimension_numbers = #tpu.dot_dimension_numbers<[0], [0], [1], [1], [0, 1, 1, 1], [], []>} : vector<32x128xbf16>, vector<32x4xbf16>, vector<128x4xf32> -> vector<128x4xf32>
    %27 = vector.extract_strided_slice %26 {offsets = [0, 0], sizes = [128, 1], strides = [1, 1]} : vector<128x4xf32> to vector<128x1xf32>
    %28 = vector.broadcast %27 : vector<128x1xf32> to vector<128x64xf32>
    %29 = arith.mulf %28, %13 : vector<128x64xf32>
    %30 = arith.truncf %29 : vector<128x64xf32> to vector<128x64xbf16>
    %c0_14 = arith.constant 0 : index
    %c0_15 = arith.constant 0 : index
    %31 = vector.load %arg13[%c0_14, %c0_15] : memref<128x256xbf16, #tpu.memory_space<vmem>>, vector<128x64xbf16>
    tpu.vector_store %arg13[%c0_14, %c0_15], %30 {strides = array<i32>} : memref<128x256xbf16, #tpu.memory_space<vmem>>, vector<128x64xbf16>,
    %32 = vector.extract_strided_slice %26 {offsets = [0, 1], sizes = [128, 1], strides = [1, 1]} : vector<128x4xf32> to vector<128x1xf32>
    %33 = vector.broadcast %32 : vector<128x1xf32> to vector<128x64xf32>
    %34 = arith.mulf %33, %13 : vector<128x64xf32>
    %35 = arith.truncf %34 : vector<128x64xf32> to vector<128x64xbf16>
    %c0_16 = arith.constant 0 : index
    %c64 = arith.constant 64 : index
    %36 = vector.load %arg13[%c0_16, %c64] : memref<128x256xbf16, #tpu.memory_space<vmem>>, vector<128x64xbf16>
    tpu.vector_store %arg13[%c0_16, %c64], %35 {strides = array<i32>} : memref<128x256xbf16, #tpu.memory_space<vmem>>, vector<128x64xbf16>,
    %37 = vector.extract_strided_slice %26 {offsets = [0, 2], sizes = [128, 1], strides = [1, 1]} : vector<128x4xf32> to vector<128x1xf32>
    %38 = vector.broadcast %37 : vector<128x1xf32> to vector<128x64xf32>
    %39 = arith.mulf %38, %13 : vector<128x64xf32>
    %40 = arith.truncf %39 : vector<128x64xf32> to vector<128x64xbf16>
    %c0_17 = arith.constant 0 : index
    %c128 = arith.constant 128 : index
    %41 = vector.load %arg13[%c0_17, %c128] : memref<128x256xbf16, #tpu.memory_space<vmem>>, vector<128x64xbf16>
    tpu.vector_store %arg13[%c0_17, %c128], %40 {strides = array<i32>} : memref<128x256xbf16, #tpu.memory_space<vmem>>, vector<128x64xbf16>,
    %42 = vector.extract_strided_slice %26 {offsets = [0, 3], sizes = [128, 1], strides = [1, 1]} : vector<128x4xf32> to vector<128x1xf32>
    %43 = vector.broadcast %42 : vector<128x1xf32> to vector<128x64xf32>
    %44 = arith.mulf %43, %13 : vector<128x64xf32>
    %45 = arith.truncf %44 : vector<128x64xf32> to vector<128x64xbf16>
    %c0_18 = arith.constant 0 : index
    %c192 = arith.constant 192 : index
    %46 = vector.load %arg13[%c0_18, %c192] : memref<128x256xbf16, #tpu.memory_space<vmem>>, vector<128x64xbf16>
    tpu.vector_store %arg13[%c0_18, %c192], %45 {strides = array<i32>} : memref<128x256xbf16, #tpu.memory_space<vmem>>, vector<128x64xbf16>,
    %c0_19 = arith.constant 0 : index
    %c0_20 = arith.constant 0 : index
    %47 = vector.load %arg13[%c0_19, %c0_20] : memref<128x256xbf16, #tpu.memory_space<vmem>>, vector<128x256xbf16>
    %c0_21 = arith.constant 0 : index
    %c0_22 = arith.constant 0 : index
    %48 = vector.load %arg8[%c0_21, %c0_22] : memref<256x128xbf16, #tpu.memory_space<vmem>>, vector<256x128xbf16>
    %cst_23 = arith.constant dense<0.000000e+00> : vector<128x128xf32>
    %49 = tpu.matmul %47, %48, %cst_23 {dimension_numbers = #tpu.dot_dimension_numbers<[1], [0], [0], [1], [0, 0, 1, 1], [], []>} : vector<128x256xbf16>, vector<256x128xbf16>, vector<128x128xf32> -> vector<128x128xf32>
    %c0_24 = arith.constant 0 : index
    %c0_25 = arith.constant 0 : index
    %50 = vector.load %arg12[%c0_24, %c0_25] : memref<32x128xf32, #tpu.memory_space<vmem>>, vector<32x128xf32>
    %51 = arith.truncf %49 : vector<128x128xf32> to vector<128x128xbf16>
    %cst_26 = arith.constant dense<0.000000e+00> : vector<32x128xf32>
    %52 = tpu.matmul %24, %51, %cst_26 {dimension_numbers = #tpu.dot_dimension_numbers<[1], [0], [0], [1], [0, 0, 1, 1], [], []>} : vector<32x128xbf16>, vector<128x128xbf16>, vector<32x128xf32> -> vector<32x128xf32>
    %53 = arith.addf %50, %52 : vector<32x128xf32>
    %c0_27 = arith.constant 0 : index
    %c0_28 = arith.constant 0 : index
    %54 = vector.load %arg12[%c0_27, %c0_28] : memref<32x128xf32, #tpu.memory_space<vmem>>, vector<32x128xf32>
    tpu.vector_store %arg12[%c0_27, %c0_28], %53 {strides = array<i32>} : memref<32x128xf32, #tpu.memory_space<vmem>>, vector<32x128xf32>,
    %c2_i32 = arith.constant 2 : i32
    %55 = arith.cmpi eq, %arg1, %c2_i32 : i32
    %56 = arith.extui %55 : i1 to i32
    %c0_i32_29 = arith.constant 0 : i32
    %57 = arith.cmpi ne, %56, %c0_i32_29 : i32
    scf.if %57 {
      %c0_i32_30 = arith.constant 0 : i32
      %58 = arith.cmpi eq, %arg0, %c0_i32_30 : i32
      %59 = arith.extui %58 : i1 to i32
      %60 = arith.sitofp %59 : i32 to f32
      %c0_31 = arith.constant 0 : index
      %c0_32 = arith.constant 0 : index
      %61 = vector.load %arg12[%c0_31, %c0_32] : memref<32x128xf32, #tpu.memory_space<vmem>>, vector<32x128xf32>
      %c0_33 = arith.constant 0 : index
      %c0_34 = arith.constant 0 : index
      %62 = vector.load %arg9[%c0_33, %c0_34] : memref<4x128xf32, #tpu.memory_space<vmem>>, vector<4x128xf32>
      %cst_35 = arith.constant dense<0.000000e+00> : vector<32x128xf32>
      %63 = tpu.matmul %3, %62, %cst_35 {dimension_numbers = #tpu.dot_dimension_numbers<[1], [0], [0], [1], [0, 0, 1, 1], [], []>} : vector<32x4xf32>, vector<4x128xf32>, vector<32x128xf32> -> vector<32x128xf32>
      %c0_36 = arith.constant 0 : index
      %c0_37 = arith.constant 0 : index
      %64 = vector.load %arg10[%c0_36, %c0_37] : memref<1x128xf32, #tpu.memory_space<vmem>>, vector<1x128xf32>
      %65 = vector.broadcast %64 : vector<1x128xf32> to vector<32x128xf32>
      %66 = arith.addf %63, %65 : vector<32x128xf32>
      %67 = vector.broadcast %60 : f32 to vector<32x128xf32>
      %68 = arith.mulf %67, %66 : vector<32x128xf32>
      %69 = arith.addf %61, %68 : vector<32x128xf32>
      %c0_38 = arith.constant 0 : index
      %c0_39 = arith.constant 0 : index
      %c0_40 = arith.constant 0 : index
      %70 = vector.load %arg11[%c0_38, %c0_39, %c0_40] : memref<1x32x128xf32, #tpu.memory_space<vmem>>, vector<1x32x128xf32>
      %71 = vector.shape_cast %70 : vector<1x32x128xf32> to vector<32x128xf32>
      %72 = vector.shape_cast %69 : vector<32x128xf32> to vector<1x32x128xf32>
      tpu.vector_store %arg11[%c0_38, %c0_39, %c0_40], %72 {strides = array<i32>} : memref<1x32x128xf32, #tpu.memory_space<vmem>>, vector<1x32x128xf32>,
    } else {
    }
    return
  }
  func.func @transform_0(%arg0: i32, %arg1: i32) -> (i32, i32) {
    %c0_i32 = arith.constant 0 : i32
    %c0_i32_0 = arith.constant 0 : i32
    %c0_i32_1 = arith.constant 0 : i32
    return %c0_i32, %c0_i32_0 : i32, i32
  }
  func.func @transform_1(%arg0: i32, %arg1: i32) -> (i32, i32) {
    %c3_i32 = arith.constant 3 : i32
    %0 = arith.muli %arg0, %c3_i32 : i32
    %1 = arith.addi %0, %arg1 : i32
    %c0_i32 = arith.constant 0 : i32
    %c0_i32_0 = arith.constant 0 : i32
    return %1, %c0_i32 : i32, i32
  }
  func.func @transform_2(%arg0: i32, %arg1: i32) -> (i32, i32) {
    %c3_i32 = arith.constant 3 : i32
    %0 = arith.muli %arg0, %c3_i32 : i32
    %1 = arith.addi %0, %arg1 : i32
    %c0_i32 = arith.constant 0 : i32
    %c0_i32_0 = arith.constant 0 : i32
    return %c0_i32, %1 : i32, i32
  }
  func.func @transform_3(%arg0: i32, %arg1: i32) -> (i32, i32) {
    %c3_i32 = arith.constant 3 : i32
    %0 = arith.muli %arg0, %c3_i32 : i32
    %1 = arith.addi %0, %arg1 : i32
    %c0_i32 = arith.constant 0 : i32
    %c0_i32_0 = arith.constant 0 : i32
    return %c0_i32, %1 : i32, i32
  }
  func.func @transform_4(%arg0: i32, %arg1: i32) -> (i32, i32) {
    %c0_i32 = arith.constant 0 : i32
    %c0_i32_0 = arith.constant 0 : i32
    %c0_i32_1 = arith.constant 0 : i32
    return %c0_i32, %c0_i32_0 : i32, i32
  }
  func.func @transform_5(%arg0: i32, %arg1: i32) -> (i32, i32) {
    %c0_i32 = arith.constant 0 : i32
    %c0_i32_0 = arith.constant 0 : i32
    %c0_i32_1 = arith.constant 0 : i32
    return %c0_i32, %c0_i32_0 : i32, i32
  }
  func.func @transform_6(%arg0: i32, %arg1: i32) -> (i32, i32) {
    %c0_i32 = arith.constant 0 : i32
    %c0_i32_0 = arith.constant 0 : i32
    %c0_i32_1 = arith.constant 0 : i32
    return %c0_i32, %c0_i32_0 : i32, i32
  }
  func.func @transform_7(%arg0: i32, %arg1: i32) -> (i32, i32) {
    %c0_i32 = arith.constant 0 : i32
    %c0_i32_0 = arith.constant 0 : i32
    %c0_i32_1 = arith.constant 0 : i32
    return %c0_i32, %c0_i32_0 : i32, i32
  }
  func.func @transform_8(%arg0: i32, %arg1: i32) -> (i32, i32) {
    %c0_i32 = arith.constant 0 : i32
    %c0_i32_0 = arith.constant 0 : i32
    %c0_i32_1 = arith.constant 0 : i32
    return %c0_i32, %c0_i32_0 : i32, i32
  }
  func.func @transform_9(%arg0: i32, %arg1: i32) -> (i32, i32, i32) {
    %c0_i32 = arith.constant 0 : i32
    %c0_i32_0 = arith.constant 0 : i32
    %c0_i32_1 = arith.constant 0 : i32
    return %arg0, %c0_i32, %c0_i32_0 : i32, i32, i32
  }
}

</mosaic_0001>

<llo_original>
// kernel: tpu_custom_call.1
$region0: #{tpu_custom_call.1}
  #allocation0 [shape = 'u32[]', space=smem, size = 0x4, offset = 0x4, fixed_abs, tag = 'smem constant byte address 0x4 - core index']
  #allocation1 [shape = 'u32[144,128]{1,0:T(1,128)}', space=vmem, size = 0x12000, scoped, tag = 'internal scratch']
  #allocation2 [shape = 'f32[32,128]{1,0:T(8,128)}', space=vmem, size = 0x4000, scoped, tag = 'scratch operand']
  #allocation3 [shape = 'bf16[128,256]{1,0:T(8,128)(2,1)}', space=vmem, size = 0x10000, scoped, tag = 'scratch operand']
  %s0 = inlined_call_operand.vmem [shape: f32[32,4], index: 0, kind: input, shape index: {}]
  %s1 = inlined_call_operand.vmem [shape: bf16[384,6], index: 1, kind: input, shape index: {}]
  %s2 = inlined_call_operand.vmem [shape: s32[1,384], index: 2, kind: input, shape index: {}]
  %s3 = inlined_call_operand.vmem [shape: s32[1,384], index: 3, kind: input, shape index: {}]
  %s4 = inlined_call_operand.vmem [shape: bf16[6,64], index: 4, kind: input, shape index: {}]
  %s5 = inlined_call_operand.vmem [shape: f32[1,64], index: 5, kind: input, shape index: {}]
  %s6 = inlined_call_operand.vmem [shape: bf16[256,128], index: 6, kind: input, shape index: {}]
  %s7 = inlined_call_operand.vmem [shape: f32[4,128], index: 7, kind: input, shape index: {}]
  %s8 = inlined_call_operand.vmem [shape: f32[1,128], index: 8, kind: input, shape index: {}]
  %s9 = inlined_call_operand.hbm [shape: f32[1,32,128], index: 9, kind: output, shape index: {}]
  %s10 = sld [smem:[#allocation0]]
  $region77: #{tpu_custom_call.1} parent=0
    _
  %s12 = ssub.s32 1, %s10
  %s13 = scalar_select 0, %s12, %s10
  $region1: #{tpu_custom_call.1} parent=0
    #allocation4 [shape = 'u8[16384]{0}', space=vmem, size = 0x4000, scoped, tag = 'output window, operand 0, single buffered']
    #allocation5 [shape = 's32[2]{0}', space=sflag, size = 0x8, scoped, tag = 'scoped memory for tpu_custom_call.1']
    %14 = vsyncpa [#allocation5], 0
    loop: start=0, step=1, limit=5
    $region2: #{tpu_custom_call.1} parent=1 // loop_pre_header
      _
    $region3: #{tpu_custom_call.1} parent=1 // loop_header
      %s16 = sphi 0, %s20
      %p17 = scmp.ge.s32.totalorder %s16, 5
      %s23 = sphi 0, %s35
      %s24 = sphi 0, %s31
      %s25 = sphi 0, %s23
      %s26 = sphi 0, %s24
      %s27 = sphi 0, %s25
      %s28 = sphi 0, %s26
      %s36 = sphi 0, %s36
      %s38 = sphi 0, %s36
      %s39 = sphi 0, %s38
      %s53 = sphi 0, %s39
      %s63 = sphi 0, %s65
      %s66 = sphi 0, %s63
      %s67 = sphi 0, %s66
      %s83 = sphi 0, %s67
      %s93 = sphi 0, %s95
      %s96 = sphi 0, %s93
      %s97 = sphi 0, %s96
      %s113 = sphi 0, %s97
      %s123 = sphi 0, %s125
      %s126 = sphi 0, %s123
      %s127 = sphi 0, %s126
      %s143 = sphi 0, %s127
      %s147 = sphi 0, %s147
      %s149 = sphi 0, %s147
      %s150 = sphi 0, %s149
      %s164 = sphi 0, %s150
      %s168 = sphi 0, %s168
      %s170 = sphi 0, %s168
      %s171 = sphi 0, %s170
      %s185 = sphi 0, %s171
      %s189 = sphi 0, %s189
      %s191 = sphi 0, %s189
      %s192 = sphi 0, %s191
      %s206 = sphi 0, %s192
      %s210 = sphi 0, %s210
      %s212 = sphi 0, %s210
      %s213 = sphi 0, %s212
      %s227 = sphi 0, %s213
      %s231 = sphi 0, %s231
      %s233 = sphi 0, %s231
      %s234 = sphi 0, %s233
      %s248 = sphi 0, %s234
      %s254 = sphi 0, %s256
      %s257 = sphi 0, %s254
      %s258 = sphi 0, %s257
      %s274 = sphi 0, %s258
    $region4: #{tpu_custom_call.1} parent=1 // loop_header_branch
      %19 = sbr.rel (%p17) target = $region8
    $region5: #{tpu_custom_call.1} parent=1 // loop_body
      %s21 = ssub.s32 %s16, 1
      %s22 = ssub.s32 %s16, 2
      %s29 = sadd.s32 1, %s24
      %p30 = scmp.ge.s32.totalorder %s29, 3
      %s31 = scalar_select %p30, 0, %s29
      %s32 = sadd.s32 1, %s23
      %s33 = scalar_select %p30, %s32, %s23
      %p34 = scmp.ge.s32.totalorder %s33, 1
      %s35 = scalar_select %p34, 0, %s33
      %s37 = sadd.s32 %s36, 1
      %p40 = scmp.eq.s32.totalorder %s16, 2
      %p41 = scmp.ne.s32.totalorder %s36, %s38
      %p42 = scmp.eq.s32.totalorder %s16, 0
      %p43 = por %p41, %p42
      %p44 = scmp.ne.s32.totalorder %s36, %s38
      %p45 = scmp.eq.s32.totalorder %s21, 2
      %p46 = por %p44, %p45
      %p47 = scmp.ne.s32.totalorder %s38, %s39
      %p48 = scmp.eq.s32.totalorder %s21, 0
      %p49 = por %p47, %p48
      %p50 = scmp.ne.s32.totalorder %s38, %s39
      %p51 = scmp.eq.s32.totalorder %s22, 2
      %p52 = por %p50, %p51
      %p54 = scmp.ne.s32.totalorder %s39, %s53
      %p55 = scmp.eq.s32.totalorder %s22, 0
      %p56 = por %p54, %p55
      %s57 = smul.u32 %s23, 3
      %s58 = sadd.s32 %s57, %s24
      %s59 = smul.u32 %s35, 3
      %s60 = sadd.s32 %s59, %s31
      %s61 = ssub.s32 %s58, %s60
      %p62 = scmp.eq.s32.totalorder %s61, 0
      %s64 = sadd.s32 %s63, 1
      %s65 = scalar_select %p62, %s63, %s64
      %p68 = pneg %p62
      %p69 = scmp.eq.s32.totalorder %s16, 2
      %p70 = por %p68, %p69
      %p71 = scmp.ne.s32.totalorder %s63, %s66
      %p72 = scmp.eq.s32.totalorder %s16, 0
      %p73 = por %p71, %p72
      %p74 = scmp.ne.s32.totalorder %s63, %s66
      %p75 = scmp.eq.s32.totalorder %s21, 2
      %p76 = por %p74, %p75
      %p77 = scmp.ne.s32.totalorder %s66, %s67
      %p78 = scmp.eq.s32.totalorder %s21, 0
      %p79 = por %p77, %p78
      %p80 = scmp.ne.s32.totalorder %s66, %s67
      %p81 = scmp.eq.s32.totalorder %s22, 2
      %p82 = por %p80, %p81
      %p84 = scmp.ne.s32.totalorder %s67, %s83
      %p85 = scmp.eq.s32.totalorder %s22, 0
      %p86 = por %p84, %p85
      %s87 = smul.u32 %s23, 3
      %s88 = sadd.s32 %s87, %s24
      %s89 = smul.u32 %s35, 3
      %s90 = sadd.s32 %s89, %s31
      %s91 = ssub.s32 %s88, %s90
      %p92 = scmp.eq.s32.totalorder %s91, 0
      %s94 = sadd.s32 %s93, 1
      %s95 = scalar_select %p92, %s93, %s94
      %p98 = pneg %p92
      %p99 = scmp.eq.s32.totalorder %s16, 2
      %p100 = por %p98, %p99
      %p101 = scmp.ne.s32.totalorder %s93, %s96
      %p102 = scmp.eq.s32.totalorder %s16, 0
      %p103 = por %p101, %p102
      %p104 = scmp.ne.s32.totalorder %s93, %s96
      %p105 = scmp.eq.s32.totalorder %s21, 2
      %p106 = por %p104, %p105
      %p107 = scmp.ne.s32.totalorder %s96, %s97
      %p108 = scmp.eq.s32.totalorder %s21, 0
      %p109 = por %p107, %p108
      %p110 = scmp.ne.s32.totalorder %s96, %s97
      %p111 = scmp.eq.s32.totalorder %s22, 2
      %p112 = por %p110, %p111
      %p114 = scmp.ne.s32.totalorder %s97, %s113
      %p115 = scmp.eq.s32.totalorder %s22, 0
      %p116 = por %p114, %p115
      %s117 = smul.u32 %s23, 3
      %s118 = sadd.s32 %s117, %s24
      %s119 = smul.u32 %s35, 3
      %s120 = sadd.s32 %s119, %s31
      %s121 = ssub.s32 %s118, %s120
      %p122 = scmp.eq.s32.totalorder %s121, 0
      %s124 = sadd.s32 %s123, 1
      %s125 = scalar_select %p122, %s123, %s124
      %p128 = pneg %p122
      %p129 = scmp.eq.s32.totalorder %s16, 2
      %p130 = por %p128, %p129
      %p131 = scmp.ne.s32.totalorder %s123, %s126
      %p132 = scmp.eq.s32.totalorder %s16, 0
      %p133 = por %p131, %p132
      %p134 = scmp.ne.s32.totalorder %s123, %s126
      %p135 = scmp.eq.s32.totalorder %s21, 2
      %p136 = por %p134, %p135
      %p137 = scmp.ne.s32.totalorder %s126, %s127
      %p138 = scmp.eq.s32.totalorder %s21, 0
      %p139 = por %p137, %p138
      %p140 = scmp.ne.s32.totalorder %s126, %s127
      %p141 = scmp.eq.s32.totalorder %s22, 2
      %p142 = por %p140, %p141
      %p144 = scmp.ne.s32.totalorder %s127, %s143
      %p145 = scmp.eq.s32.totalorder %s22, 0
      %p146 = por %p144, %p145
      %s148 = sadd.s32 %s147, 1
      %p151 = scmp.eq.s32.totalorder %s16, 2
      %p152 = scmp.ne.s32.totalorder %s147, %s149
      %p153 = scmp.eq.s32.totalorder %s16, 0
      %p154 = por %p152, %p153
      %p155 = scmp.ne.s32.totalorder %s147, %s149
      %p156 = scmp.eq.s32.totalorder %s21, 2
      %p157 = por %p155, %p156
      %p158 = scmp.ne.s32.totalorder %s149, %s150
      %p159 = scmp.eq.s32.totalorder %s21, 0
      %p160 = por %p158, %p159
      %p161 = scmp.ne.s32.totalorder %s149, %s150
      %p162 = scmp.eq.s32.totalorder %s22, 2
      %p163 = por %p161, %p162
      %p165 = scmp.ne.s32.totalorder %s150, %s164
      %p166 = scmp.eq.s32.totalorder %s22, 0
      %p167 = por %p165, %p166
      %s169 = sadd.s32 %s168, 1
      %p172 = scmp.eq.s32.totalorder %s16, 2
      %p173 = scmp.ne.s32.totalorder %s168, %s170
      %p174 = scmp.eq.s32.totalorder %s16, 0
      %p175 = por %p173, %p174
      %p176 = scmp.ne.s32.totalorder %s168, %s170
      %p177 = scmp.eq.s32.totalorder %s21, 2
      %p178 = por %p176, %p177
      %p179 = scmp.ne.s32.totalorder %s170, %s171
      %p180 = scmp.eq.s32.totalorder %s21, 0
      %p181 = por %p179, %p180
      %p182 = scmp.ne.s32.totalorder %s170, %s171
      %p183 = scmp.eq.s32.totalorder %s22, 2
      %p184 = por %p182, %p183
      %p186 = scmp.ne.s32.totalorder %s171, %s185
      %p187 = scmp.eq.s32.totalorder %s22, 0
      %p188 = por %p186, %p187
      %s190 = sadd.s32 %s189, 1
      %p193 = scmp.eq.s32.totalorder %s16, 2
      %p194 = scmp.ne.s32.totalorder %s189, %s191
      %p195 = scmp.eq.s32.totalorder %s16, 0
      %p196 = por %p194, %p195
      %p197 = scmp.ne.s32.totalorder %s189, %s191
      %p198 = scmp.eq.s32.totalorder %s21, 2
      %p199 = por %p197, %p198
      %p200 = scmp.ne.s32.totalorder %s191, %s192
      %p201 = scmp.eq.s32.totalorder %s21, 0
      %p202 = por %p200, %p201
      %p203 = scmp.ne.s32.totalorder %s191, %s192
      %p204 = scmp.eq.s32.totalorder %s22, 2
      %p205 = por %p203, %p204
      %p207 = scmp.ne.s32.totalorder %s192, %s206
      %p208 = scmp.eq.s32.totalorder %s22, 0
      %p209 = por %p207, %p208
      %s211 = sadd.s32 %s210, 1
      %p214 = scmp.eq.s32.totalorder %s16, 2
      %p215 = scmp.ne.s32.totalorder %s210, %s212
      %p216 = scmp.eq.s32.totalorder %s16, 0
      %p217 = por %p215, %p216
      %p218 = scmp.ne.s32.totalorder %s210, %s212
      %p219 = scmp.eq.s32.totalorder %s21, 2
      %p220 = por %p218, %p219
      %p221 = scmp.ne.s32.totalorder %s212, %s213
      %p222 = scmp.eq.s32.totalorder %s21, 0
      %p223 = por %p221, %p222
      %p224 = scmp.ne.s32.totalorder %s212, %s213
      %p225 = scmp.eq.s32.totalorder %s22, 2
      %p226 = por %p224, %p225
      %p228 = scmp.ne.s32.totalorder %s213, %s227
      %p229 = scmp.eq.s32.totalorder %s22, 0
      %p230 = por %p228, %p229
      %s232 = sadd.s32 %s231, 1
      %p235 = scmp.eq.s32.totalorder %s16, 2
      %p236 = scmp.ne.s32.totalorder %s231, %s233
      %p237 = scmp.eq.s32.totalorder %s16, 0
      %p238 = por %p236, %p237
      %p239 = scmp.ne.s32.totalorder %s231, %s233
      %p240 = scmp.eq.s32.totalorder %s21, 2
      %p241 = por %p239, %p240
      %p242 = scmp.ne.s32.totalorder %s233, %s234
      %p243 = scmp.eq.s32.totalorder %s21, 0
      %p244 = por %p242, %p243
      %p245 = scmp.ne.s32.totalorder %s233, %s234
      %p246 = scmp.eq.s32.totalorder %s22, 2
      %p247 = por %p245, %p246
      %p249 = scmp.ne.s32.totalorder %s234, %s248
      %p250 = scmp.eq.s32.totalorder %s22, 0
      %p251 = por %p249, %p250
      %s252 = ssub.s32 %s23, %s35
      %p253 = scmp.eq.s32.totalorder %s252, 0
      %s255 = sadd.s32 %s254, 1
      %s256 = scalar_select %p253, %s254, %s255
      %p259 = pneg %p253
      %p260 = scmp.eq.s32.totalorder %s16, 2
      %p261 = por %p259, %p260
      %p262 = scmp.ne.s32.totalorder %s254, %s257
      %p263 = scmp.eq.s32.totalorder %s16, 0
      %p264 = por %p262, %p263
      %p265 = scmp.ne.s32.totalorder %s254, %s257
      %p266 = scmp.eq.s32.totalorder %s21, 2
      %p267 = por %p265, %p266
      %p268 = scmp.ne.s32.totalorder %s257, %s258
      %p269 = scmp.eq.s32.totalorder %s21, 0
      %p270 = por %p268, %p269
      %p271 = scmp.ne.s32.totalorder %s257, %s258
      %p272 = scmp.eq.s32.totalorder %s22, 2
      %p273 = por %p271, %p272
      %p275 = scmp.ne.s32.totalorder %s258, %s274
      %p276 = scmp.eq.s32.totalorder %s22, 0
      %p277 = por %p275, %p276
      %p278 = scmp.le.s32.totalorder 1, %s16
      %p279 = scmp.lt.s32.totalorder %s16, 4
      %p280 = pnand %p278, %p279
      %p281 = pneg %p280
      // Predicated region
      $region9: #{tpu_custom_call.1} parent=5 // pred_check
        _
      $region10: #{tpu_custom_call.1} parent=5 // pred_check_branch
        %283 = sbr.rel (%p280) target = $region12
      $region11: #{tpu_custom_call.1} parent=5 // pred_region
        %s284 = ssub.s32 %s16, 1
        // Predicated region
        $region13: #{tpu_custom_call.1} parent=11 // pred_check
          %p285 = pneg %p49
        $region14: #{tpu_custom_call.1} parent=11 // pred_check_branch
          %287 = sbr.rel (%p285) target = $region16
        $region15: #{tpu_custom_call.1} parent=11 // pred_region
          _
        $region16: #{tpu_custom_call.1} parent=11 // pred_fallthru
          _
        // Predicated region
        $region17: #{tpu_custom_call.1} parent=11 // pred_check
          %p288 = pneg %p160
        $region18: #{tpu_custom_call.1} parent=11 // pred_check_branch
          %290 = sbr.rel (%p288) target = $region20
        $region19: #{tpu_custom_call.1} parent=11 // pred_region
          _
        $region20: #{tpu_custom_call.1} parent=11 // pred_fallthru
          _
        // Predicated region
        $region21: #{tpu_custom_call.1} parent=11 // pred_check
          %p291 = pneg %p181
        $region22: #{tpu_custom_call.1} parent=11 // pred_check_branch
          %293 = sbr.rel (%p291) target = $region24
        $region23: #{tpu_custom_call.1} parent=11 // pred_region
          _
        $region24: #{tpu_custom_call.1} parent=11 // pred_fallthru
          _
        // Predicated region
        $region25: #{tpu_custom_call.1} parent=11 // pred_check
          %p294 = pneg %p202
        $region26: #{tpu_custom_call.1} parent=11 // pred_check_branch
          %296 = sbr.rel (%p294) target = $region28
        $region27: #{tpu_custom_call.1} parent=11 // pred_region
          _
        $region28: #{tpu_custom_call.1} parent=11 // pred_fallthru
          _
        // Predicated region
        $region29: #{tpu_custom_call.1} parent=11 // pred_check
          %p297 = pneg %p223
        $region30: #{tpu_custom_call.1} parent=11 // pred_check_branch
          %299 = sbr.rel (%p297) target = $region32
        $region31: #{tpu_custom_call.1} parent=11 // pred_region
          _
        $region32: #{tpu_custom_call.1} parent=11 // pred_fallthru
          _
        // Predicated region
        $region33: #{tpu_custom_call.1} parent=11 // pred_check
          %p300 = pneg %p244
        $region34: #{tpu_custom_call.1} parent=11 // pred_check_branch
          %302 = sbr.rel (%p300) target = $region36
        $region35: #{tpu_custom_call.1} parent=11 // pred_region
          _
        $region36: #{tpu_custom_call.1} parent=11 // pred_fallthru
          _
      $region12: #{tpu_custom_call.1} parent=5 // pred_fallthru
        _
      %p303 = scmp.lt.s32.totalorder %s16, 3
      // Predicated region
      $region37: #{tpu_custom_call.1} parent=5 // pred_check
        %p304 = pneg %p303
      $region38: #{tpu_custom_call.1} parent=5 // pred_check_branch
        %306 = sbr.rel (%p304) target = $region40
      $region39: #{tpu_custom_call.1} parent=5 // pred_region
        // Predicated region
        $region41: #{tpu_custom_call.1} parent=39 // pred_check
          %p307 = pneg %p73
        $region42: #{tpu_custom_call.1} parent=39 // pred_check_branch
          %309 = sbr.rel (%p307) target = $region44
        $region43: #{tpu_custom_call.1} parent=39 // pred_region
          %s310 = smul.u32 %s23, 3
          %s311 = sadd.s32 %s310, %s24
          %s312 = smul.u32 16, %s311
          %p313 = scmp.lt.s32.totalorder %s312, 47
          %s314 = scalar_select %p313, %s312, 47
          %s315 = smul.addr %s314, 4
          %s316 = scalar_lea.vmem %s1, %s315
          %s317 = smul.u32 %s23, 3
          %s318 = sadd.s32 %s317, %s24
          %s319 = smul.u32 16, %s318
        $region44: #{tpu_custom_call.1} parent=39 // pred_fallthru
          _
        // Predicated region
        $region45: #{tpu_custom_call.1} parent=39 // pred_check
          %p320 = pneg %p103
        $region46: #{tpu_custom_call.1} parent=39 // pred_check_branch
          %322 = sbr.rel (%p320) target = $region48
        $region47: #{tpu_custom_call.1} parent=39 // pred_region
          %s323 = smul.u32 %s23, 3
          %s324 = sadd.s32 %s323, %s24
          %p325 = scmp.lt.s32.totalorder %s324, 2
          %s326 = scalar_select %p325, %s324, 2
          %s327 = scalar_lea.vmem %s2, %s326
          %s328 = smul.u32 %s23, 3
          %s329 = sadd.s32 %s328, %s24
        $region48: #{tpu_custom_call.1} parent=39 // pred_fallthru
          _
        // Predicated region
        $region49: #{tpu_custom_call.1} parent=39 // pred_check
          %p330 = pneg %p133
        $region50: #{tpu_custom_call.1} parent=39 // pred_check_branch
          %332 = sbr.rel (%p330) target = $region52
        $region51: #{tpu_custom_call.1} parent=39 // pred_region
          %s333 = smul.u32 %s23, 3
          %s334 = sadd.s32 %s333, %s24
          %p335 = scmp.lt.s32.totalorder %s334, 2
          %s336 = scalar_select %p335, %s334, 2
          %s337 = scalar_lea.vmem %s3, %s336
          %s338 = smul.u32 %s23, 3
          %s339 = sadd.s32 %s338, %s24
        $region52: #{tpu_custom_call.1} parent=39 // pred_fallthru
          _
      $region40: #{tpu_custom_call.1} parent=5 // pred_fallthru
        _
      %p340 = scmp.le.s32.totalorder 1, %s16
      %p341 = scmp.lt.s32.totalorder %s16, 4
      %p342 = pnand %p340, %p341
      %p343 = pneg %p342
      // Predicated region
      $region53: #{tpu_custom_call.1} parent=5 // pred_check
        _
      $region54: #{tpu_custom_call.1} parent=5 // pred_check_branch
        %345 = sbr.rel (%p342) target = $region56
      $region55: #{tpu_custom_call.1} parent=5 // pred_region
        %s346 = ssub.s32 %s16, 1
        %p347 = pneg %p49
        %p348 = pneg %p46
        %s349 = smul.u32 %s25, 3
        %s350 = sadd.s32 %s349, %s26
        %s351 = smul.u32 16, %s350
        %p352 = scmp.lt.s32.totalorder %s351, 47
        %s353 = scalar_select %p352, %s351, 47
        %s354 = smul.addr %s353, 4
        %s355 = scalar_lea.vmem %s1, %s354
        %p356 = pneg %p79
        %p357 = pneg %p76
        %s358 = smul.u32 %s25, 3
        %s359 = sadd.s32 %s358, %s26
        %p360 = scmp.lt.s32.totalorder %s359, 2
        %s361 = scalar_select %p360, %s359, 2
        %s362 = scalar_lea.vmem %s2, %s361
        %p363 = pneg %p109
        %p364 = pneg %p106
        %s365 = smul.u32 %s25, 3
        %s366 = sadd.s32 %s365, %s26
        %p367 = scmp.lt.s32.totalorder %s366, 2
        %s368 = scalar_select %p367, %s366, 2
        %s369 = scalar_lea.vmem %s3, %s368
        %p370 = pneg %p139
        %p371 = pneg %p136
        %p372 = pneg %p160
        %p373 = pneg %p157
        %p374 = pneg %p181
        %p375 = pneg %p178
        %p376 = pneg %p202
        %p377 = pneg %p199
        %p378 = pneg %p223
        %p379 = pneg %p220
        %p380 = pneg %p244
        %p381 = pneg %p241
        %p382 = pneg %p270
        %p383 = pneg %p267
        %s384 = smul.u32 %s25, 3
        %s385 = sadd.s32 %s384, %s26
        %s386 = smul.u32 16, %s385
        %p387 = scmp.lt.s32.totalorder %s386, 47
        %s388 = scalar_select %p387, %s386, 47
        %s389 = smul.addr %s388, 4
        %s390 = scalar_lea.vmem %s1, %s389
        %s391 = smul.u32 %s25, 3
        %s392 = sadd.s32 %s391, %s26
        %s393 = smul.u32 16, %s392
        %s394 = smul.u32 %s25, 3
        %s395 = sadd.s32 %s394, %s26
        %p396 = scmp.lt.s32.totalorder %s395, 2
        %s397 = scalar_select %p396, %s395, 2
        %s398 = scalar_lea.vmem %s2, %s397
        %s399 = smul.u32 %s25, 3
        %s400 = sadd.s32 %s399, %s26
        %s401 = smul.u32 %s25, 3
        %s402 = sadd.s32 %s401, %s26
        %p403 = scmp.lt.s32.totalorder %s402, 2
        %s404 = scalar_select %p403, %s402, 2
        %s405 = scalar_lea.vmem %s3, %s404
        %s406 = smul.u32 %s25, 3
        %s407 = sadd.s32 %s406, %s26
        %p409 = scmp.eq.s32.totalorder %s26, 0
        // Predicated region
        $region57: #{tpu_custom_call.1} parent=55 // pred_check
          %p410 = pneg %p409
        $region58: #{tpu_custom_call.1} parent=55 // pred_check_branch
          %412 = sbr.rel (%p410) target = $region60
        $region59: #{tpu_custom_call.1} parent=55 // pred_region
          %413 = vst [vmem:[#allocation2] sm:$0xff] 0.0
          %414 = vst [vmem:[#allocation2 + $0x8] sm:$0xff] 0.0
          %415 = vst [vmem:[#allocation2 + $0x10] sm:$0xff] 0.0
          %416 = vst [vmem:[#allocation2 + $0x18] sm:$0xff] 0.0
        $region60: #{tpu_custom_call.1} parent=55 // pred_fallthru
          _
        %v417 = vld [vmem:[%s0] sm:$0xff]
        %v418 = vld [vmem:[%s0 + $0x8] sm:$0xff]
        %v419 = vld [vmem:[%s0 + $0x10] sm:$0xff]
        %v420 = vld [vmem:[%s0 + $0x18] sm:$0xff]
        %v421 = vld [vmem:[%s390] sm:$0xf]
        %v422 = vld [vmem:[%s390 + $0x4] sm:$0xf]
        %v423 = vld [vmem:[%s390 + $0x8] sm:$0xf]
        %v424 = vld [vmem:[%s390 + $0xc] sm:$0xf]
        %v425 = vld [vmem:[%s390 + $0x10] sm:$0xf]
        %v426 = vld [vmem:[%s390 + $0x14] sm:$0xf]
        %v427 = vld [vmem:[%s390 + $0x18] sm:$0xf]
        %v428 = vld [vmem:[%s390 + $0x1c] sm:$0xf]
        %v429 = vld [vmem:[%s390 + $0x20] sm:$0xf]
        %v430 = vld [vmem:[%s390 + $0x24] sm:$0xf]
        %v431 = vld [vmem:[%s390 + $0x28] sm:$0xf]
        %v432 = vld [vmem:[%s390 + $0x2c] sm:$0xf]
        %v433 = vld [vmem:[%s390 + $0x30] sm:$0xf]
        %v434 = vld [vmem:[%s390 + $0x34] sm:$0xf]
        %v435 = vld [vmem:[%s390 + $0x38] sm:$0xf]
        %v436 = vld [vmem:[%s390 + $0x3c] sm:$0xf]
        %v437 = vld [vmem:[%s398] sm:$0x1]
        %v438 = vld [vmem:[%s405] sm:$0x1]
        %v439 = vld [vmem:[%s4] sm:$0x7]
        %v440 = vld [vmem:[%s5] sm:$0x1]
        %v442 = vlaneseq
        %v443 = vshrl.u32 %v442, 7
        %v444 = vsub.s32 0, %v443
        %v445 = vrot.slane %v440, %v444
        %v463 = vunpack.c.l.b16 %v421
        %v464 = vunpack.c.l.b16 %v422
        %v465 = vunpack.c.l.b16 %v423
        %v466 = vunpack.c.l.b16 %v424
        %v467 = vunpack.c.l.b16 %v425
        %v468 = vunpack.c.l.b16 %v426
        %v469 = vunpack.c.l.b16 %v427
        %v470 = vunpack.c.l.b16 %v428
        %v471 = vunpack.c.l.b16 %v429
        %v472 = vunpack.c.l.b16 %v430
        %v473 = vunpack.c.l.b16 %v431
        %v474 = vunpack.c.l.b16 %v432
        %v475 = vunpack.c.l.b16 %v433
        %v476 = vunpack.c.l.b16 %v434
        %v477 = vunpack.c.l.b16 %v435
        %v478 = vunpack.c.l.b16 %v436
        %v479 = vpack.c.b16 %v464, %v463
        %v480 = vpack.c.b16 %v466, %v465
        %v481 = vpack.c.b16 %v468, %v467
        %v482 = vpack.c.b16 %v470, %v469
        %v483 = vpack.c.b16 %v472, %v471
        %v484 = vpack.c.b16 %v474, %v473
        %v485 = vpack.c.b16 %v476, %v475
        %v486 = vpack.c.b16 %v478, %v477
        %vm487 = vcmask 48128
        %v489 = vsel %vm487, %v479, 0
        %v492 = vsel %vm487, %v480, 0
        %v495 = vsel %vm487, %v481, 0
        %v498 = vsel %vm487, %v482, 0
        %v501 = vsel %vm487, %v483, 0
        %v504 = vsel %vm487, %v484, 0
        %v507 = vsel %vm487, %v485, 0
        %v510 = vsel %vm487, %v486, 0
        %vm512 = vcmask 1042432
        %v514 = vsel %vm512, %v439, 0
        %516 = vmatprep.subr.bf16.mxu0 0
        %517 = vmatpush1.bf16.msra.mxu0 0
        %518 = vmatprep.subr.bf16.mxu0 0
        %519 = vmatpush1.bf16.msra.mxu0 0
        %520 = vmatprep.subr.bf16.mxu0 0
        %521 = vmatpush1.bf16.msra.mxu0 0
        %522 = vmatprep.subr.bf16.mxu0 0
        %523 = vmatpush1.bf16.msra.mxu0 0
        %524 = vmatprep.subr.bf16.mxu0 0
        %525 = vmatpush1.bf16.msra.mxu0 0
        %526 = vmatprep.subr.bf16.mxu0 0
        %527 = vmatpush1.bf16.msra.mxu0 0
        %528 = vmatprep.subr.bf16.mxu0 0
        %529 = vmatpush1.bf16.msra.mxu0 0
        %530 = vmatprep.subr.bf16.mxu0 0
        %531 = vmatpush1.bf16.msra.mxu0 %v514
        %532 = vmatprep.subr.bf16.mxu0 0
        %533 = vmatpush2.bf16.msra.mxu0 0
        %534 = vmatprep.subr.bf16.mxu0 0
        %535 = vmatpush2.bf16.msra.mxu0 0
        %536 = vmatprep.subr.bf16.mxu0 0
        %537 = vmatpush2.bf16.msra.mxu0 0
        %538 = vmatprep.subr.bf16.mxu0 0
        %539 = vmatpush2.bf16.msra.mxu0 0
        %540 = vmatprep.subr.bf16.mxu0 0
        %541 = vmatpush2.bf16.msra.mxu0 0
        %542 = vmatprep.subr.bf16.mxu0 0
        %543 = vmatpush2.bf16.msra.mxu0 0
        %544 = vmatprep.subr.bf16.mxu0 0
        %545 = vmatpush2.bf16.msra.mxu0 0
        %546 = vmatprep.subr.bf16.mxu0 0
        %547 = vmatpush2.bf16.msra.mxu0 0
        %548 = vmatprep.mubr.bf16.mxu0 0
        %549 = vmatmul.mubr.bf16.gmra.mxu0 %v489
        %v550 = vpop.f32.mrf.mxu0
        %v551 = vadd.f32 %v445, %v550
        %v552 = vpop.f32.mrf.mxu0
        %v553 = vpop.f32.mrf.mxu0
        %v554 = vadd.f32 %v445, %v553
        %v555 = vpop.f32.mrf.mxu0
        %556 = vmatprep.mubr.bf16.mxu0 0
        %557 = vmatmul.mubr.bf16.gmra.mxu0 %v492
        %v558 = vpop.f32.mrf.mxu0
        %v559 = vadd.f32 %v445, %v558
        %v560 = vpop.f32.mrf.mxu0
        %v561 = vpop.f32.mrf.mxu0
        %v562 = vadd.f32 %v445, %v561
        %v563 = vpop.f32.mrf.mxu0
        %564 = vmatprep.mubr.bf16.mxu0 0
        %565 = vmatmul.mubr.bf16.gmra.mxu0 %v495
        %v566 = vpop.f32.mrf.mxu0
        %v567 = vadd.f32 %v445, %v566
        %v568 = vpop.f32.mrf.mxu0
        %v569 = vpop.f32.mrf.mxu0
        %v570 = vadd.f32 %v445, %v569
        %v571 = vpop.f32.mrf.mxu0
        %572 = vmatprep.mubr.bf16.mxu0 0
        %573 = vmatmul.mubr.bf16.gmra.mxu0 %v498
        %v574 = vpop.f32.mrf.mxu0
        %v575 = vadd.f32 %v445, %v574
        %v576 = vpop.f32.mrf.mxu0
        %v577 = vpop.f32.mrf.mxu0
        %v578 = vadd.f32 %v445, %v577
        %v579 = vpop.f32.mrf.mxu0
        %580 = vmatprep.mubr.bf16.mxu0 0
        %581 = vmatmul.mubr.bf16.gmra.mxu0 %v501
        %v582 = vpop.f32.mrf.mxu0
        %v583 = vadd.f32 %v445, %v582
        %v584 = vpop.f32.mrf.mxu0
        %v585 = vpop.f32.mrf.mxu0
        %v586 = vadd.f32 %v445, %v585
        %v587 = vpop.f32.mrf.mxu0
        %588 = vmatprep.mubr.bf16.mxu0 0
        %589 = vmatmul.mubr.bf16.gmra.mxu0 %v504
        %v590 = vpop.f32.mrf.mxu0
        %v591 = vadd.f32 %v445, %v590
        %v592 = vpop.f32.mrf.mxu0
        %v593 = vpop.f32.mrf.mxu0
        %v594 = vadd.f32 %v445, %v593
        %v595 = vpop.f32.mrf.mxu0
        %596 = vmatprep.mubr.bf16.mxu0 0
        %597 = vmatmul.mubr.bf16.gmra.mxu0 %v507
        %v598 = vpop.f32.mrf.mxu0
        %v599 = vadd.f32 %v445, %v598
        %v600 = vpop.f32.mrf.mxu0
        %v601 = vpop.f32.mrf.mxu0
        %v602 = vadd.f32 %v445, %v601
        %v603 = vpop.f32.mrf.mxu0
        %604 = vmatprep.mubr.bf16.mxu0 0
        %605 = vmatmul.mubr.bf16.gmra.mxu0 %v510
        %v606 = vpop.f32.mrf.mxu0
        %v607 = vadd.f32 %v445, %v606
        %v608 = vpop.f32.mrf.mxu0
        %v609 = vpop.f32.mrf.mxu0
        %v610 = vadd.f32 %v445, %v609
        %v611 = vpop.f32.mrf.mxu0
        %612 = vdwg.mxu0
        %v613 = vmax.f32 %v551, 0.0
        %v614 = vmax.f32 %v554, 0.0
        %v615 = vmax.f32 %v559, 0.0
        %v616 = vmax.f32 %v562, 0.0
        %v617 = vmax.f32 %v567, 0.0
        %v618 = vmax.f32 %v570, 0.0
        %v619 = vmax.f32 %v575, 0.0
        %v620 = vmax.f32 %v578, 0.0
        %v621 = vmax.f32 %v583, 0.0
        %v622 = vmax.f32 %v586, 0.0
        %v623 = vmax.f32 %v591, 0.0
        %v624 = vmax.f32 %v594, 0.0
        %v625 = vmax.f32 %v599, 0.0
        %v626 = vmax.f32 %v602, 0.0
        %v627 = vmax.f32 %v607, 0.0
        %v628 = vmax.f32 %v610, 0.0
        %v629 = vlaneseq
        %v630 = vshrl.u32 %v629, 7
        %v631 = vadd.s32 %v630, 8
        %v632 = vadd.s32 %v630, 16
        %v633 = vadd.s32 %v630, 24
        %v634 = vlaneseq
        %v635 = vshrl.u32 %v634, 7
        %v636 = vsub.s32 0, %v635
        %v637 = vrot.slane %v437, %v636
        %vm638 = vcmp.eq.s32.totalorder %v630, %v637
        %vm639 = vcmp.eq.s32.totalorder %v631, %v637
        %vm640 = vcmp.eq.s32.totalorder %v632, %v637
        %vm641 = vcmp.eq.s32.totalorder %v633, %v637
        %v642 = vsel %vm638, 1, 0
        %v643 = vsel %vm639, 1, 0
        %v644 = vsel %vm640, 1, 0
        %v645 = vsel %vm641, 1, 0
        %v646 = vcvt.s32.f32 %v642
        %v647 = vcvt.s32.f32 %v643
        %v648 = vcvt.s32.f32 %v644
        %v649 = vcvt.s32.f32 %v645
        %v650 = vpack.c.bf16 %v647, %v646
        %v651 = vpack.c.bf16 %v649, %v648
        %v652 = vlaneseq
        %v653 = vshrl.u32 %v652, 7
        %v654 = vsub.s32 0, %v653
        %v655 = vrot.slane %v438, %v654
        %vm656 = vcmp.eq.s32.totalorder %v630, %v655
        %vm657 = vcmp.eq.s32.totalorder %v631, %v655
        %vm658 = vcmp.eq.s32.totalorder %v632, %v655
        %vm659 = vcmp.eq.s32.totalorder %v633, %v655
        %v660 = vsel %vm656, 1, 0
        %v661 = vsel %vm657, 1, 0
        %v662 = vsel %vm658, 1, 0
        %v663 = vsel %vm659, 1, 0
        %v664 = vcvt.s32.f32 %v660
        %v665 = vcvt.s32.f32 %v661
        %v666 = vcvt.s32.f32 %v662
        %v667 = vcvt.s32.f32 %v663
        %v668 = vpack.c.bf16 %v665, %v664
        %v669 = vpack.c.bf16 %v667, %v666
        %v670 = vpack.c.bf16 %v418, %v417
        %v671 = vpack.c.bf16 %v420, %v419
        %672 = vxpose.xlu0.c.b16.start [1/8] %v650, 128
        %673 = vxpose.xlu0.c.b16.cont [2/8] %v651, 128
        %674 = vxpose.xlu0.c.b16.cont [3/8] 0, 128
        %675 = vxpose.xlu0.c.b16.cont [4/8] 0, 128
        %676 = vxpose.xlu0.c.b16.cont [5/8] 0, 128
        %677 = vxpose.xlu0.c.b16.cont [6/8] 0, 128
        %678 = vxpose.xlu0.c.b16.cont [7/8] 0, 128
        %679 = vxpose.xlu0.c.b16.end [8/8] 0, 128
        %v680 = vpop.trf.xlu0
        %v681 = vpop.trf.xlu0
        %v682 = vpop.trf.xlu0
        %v683 = vpop.trf.xlu0
        %v684 = vpop.trf.xlu0
        %v685 = vpop.trf.xlu0
        %v686 = vpop.trf.xlu0
        %v687 = vpop.trf.xlu0
        %vm688 = vcmask 261120
        %v690 = vsel %vm688, %v680, 0
        %v693 = vsel %vm688, %v681, 0
        %v696 = vsel %vm688, %v682, 0
        %v699 = vsel %vm688, %v683, 0
        %v702 = vsel %vm688, %v684, 0
        %v705 = vsel %vm688, %v685, 0
        %v708 = vsel %vm688, %v686, 0
        %v711 = vsel %vm688, %v687, 0
        %713 = vmatprep.subr.bf16.mxu0 0
        %714 = vmatpush1.bf16.msra.mxu0 0
        %715 = vmatprep.subr.bf16.mxu0 0
        %716 = vmatpush1.bf16.msra.mxu0 0
        %717 = vmatprep.subr.bf16.mxu0 0
        %718 = vmatpush1.bf16.msra.mxu0 0
        %719 = vmatprep.subr.bf16.mxu0 0
        %720 = vmatpush1.bf16.msra.mxu0 0
        %721 = vmatprep.subr.bf16.mxu0 0
        %722 = vmatpush1.bf16.msra.mxu0 0
        %723 = vmatprep.subr.bf16.mxu0 0
        %724 = vmatpush1.bf16.msra.mxu0 0
        %725 = vmatprep.subr.bf16.mxu0 0
        %726 = vmatpush1.bf16.msra.mxu0 %v671
        %727 = vmatprep.subr.bf16.mxu0 0
        %728 = vmatpush1.bf16.msra.mxu0 %v670
        %729 = vmatprep.subr.bf16.mxu0 0
        %730 = vmatpush2.bf16.msra.mxu0 0
        %731 = vmatprep.subr.bf16.mxu0 0
        %732 = vmatpush2.bf16.msra.mxu0 0
        %733 = vmatprep.subr.bf16.mxu0 0
        %734 = vmatpush2.bf16.msra.mxu0 0
        %735 = vmatprep.subr.bf16.mxu0 0
        %736 = vmatpush2.bf16.msra.mxu0 0
        %737 = vmatprep.subr.bf16.mxu0 0
        %738 = vmatpush2.bf16.msra.mxu0 0
        %739 = vmatprep.subr.bf16.mxu0 0
        %740 = vmatpush2.bf16.msra.mxu0 0
        %741 = vmatprep.subr.bf16.mxu0 0
        %742 = vmatpush2.bf16.msra.mxu0 0
        %743 = vmatprep.subr.bf16.mxu0 0
        %744 = vmatpush2.bf16.msra.mxu0 0
        %745 = vmatprep.mubr.bf16.mxu0 0
        %746 = vmatmul.mubr.bf16.gmra.mxu0 %v690
        %v747 = vpop.f32.mrf.mxu0
        %v748 = vadd.f32 0.0, %v747
        %v749 = vpop.f32.mrf.mxu0
        %v750 = vpop.f32.mrf.mxu0
        %v751 = vadd.f32 0.0, %v750
        %v752 = vpop.f32.mrf.mxu0
        %753 = vmatprep.mubr.bf16.mxu0 0
        %754 = vmatmul.mubr.bf16.gmra.mxu0 %v693
        %v755 = vpop.f32.mrf.mxu0
        %v756 = vadd.f32 0.0, %v755
        %v757 = vpop.f32.mrf.mxu0
        %v758 = vpop.f32.mrf.mxu0
        %v759 = vadd.f32 0.0, %v758
        %v760 = vpop.f32.mrf.mxu0
        %761 = vmatprep.mubr.bf16.mxu0 0
        %762 = vmatmul.mubr.bf16.gmra.mxu0 %v696
        %v763 = vpop.f32.mrf.mxu0
        %v764 = vadd.f32 0.0, %v763
        %v765 = vpop.f32.mrf.mxu0
        %v766 = vpop.f32.mrf.mxu0
        %v767 = vadd.f32 0.0, %v766
        %v768 = vpop.f32.mrf.mxu0
        %769 = vmatprep.mubr.bf16.mxu0 0
        %770 = vmatmul.mubr.bf16.gmra.mxu0 %v699
        %v771 = vpop.f32.mrf.mxu0
        %v772 = vadd.f32 0.0, %v771
        %v773 = vpop.f32.mrf.mxu0
        %v774 = vpop.f32.mrf.mxu0
        %v775 = vadd.f32 0.0, %v774
        %v776 = vpop.f32.mrf.mxu0
        %777 = vmatprep.mubr.bf16.mxu0 0
        %778 = vmatmul.mubr.bf16.gmra.mxu0 %v702
        %v779 = vpop.f32.mrf.mxu0
        %v780 = vadd.f32 0.0, %v779
        %v781 = vpop.f32.mrf.mxu0
        %v782 = vpop.f32.mrf.mxu0
        %v783 = vadd.f32 0.0, %v782
        %v784 = vpop.f32.mrf.mxu0
        %785 = vmatprep.mubr.bf16.mxu0 0
        %786 = vmatmul.mubr.bf16.gmra.mxu0 %v705
        %v787 = vpop.f32.mrf.mxu0
        %v788 = vadd.f32 0.0, %v787
        %v789 = vpop.f32.mrf.mxu0
        %v790 = vpop.f32.mrf.mxu0
        %v791 = vadd.f32 0.0, %v790
        %v792 = vpop.f32.mrf.mxu0
        %793 = vmatprep.mubr.bf16.mxu0 0
        %794 = vmatmul.mubr.bf16.gmra.mxu0 %v708
        %v795 = vpop.f32.mrf.mxu0
        %v796 = vadd.f32 0.0, %v795
        %v797 = vpop.f32.mrf.mxu0
        %v798 = vpop.f32.mrf.mxu0
        %v799 = vadd.f32 0.0, %v798
        %v800 = vpop.f32.mrf.mxu0
        %801 = vmatprep.mubr.bf16.mxu0 0
        %802 = vmatmul.mubr.bf16.gmra.mxu0 %v711
        %v803 = vpop.f32.mrf.mxu0
        %v804 = vadd.f32 0.0, %v803
        %v805 = vpop.f32.mrf.mxu0
        %v806 = vpop.f32.mrf.mxu0
        %v807 = vadd.f32 0.0, %v806
        %v808 = vpop.f32.mrf.mxu0
        %809 = vdwg.mxu0
        %811 = vset.pattern.permute.xlu0 0
        %812 = vperm.xlu0 %811, %v748
        %v813 = vpop.permute.xlu0 %812
        %816 = vset.pattern.permute.xlu0 0
        %817 = vperm.xlu0 %816, %v751
        %v818 = vpop.permute.xlu0 %817
        %821 = vset.pattern.permute.xlu0 0
        %822 = vperm.xlu0 %821, %v756
        %v823 = vpop.permute.xlu0 %822
        %826 = vset.pattern.permute.xlu0 0
        %827 = vperm.xlu0 %826, %v759
        %v828 = vpop.permute.xlu0 %827
        %831 = vset.pattern.permute.xlu0 0
        %832 = vperm.xlu0 %831, %v764
        %v833 = vpop.permute.xlu0 %832
        %836 = vset.pattern.permute.xlu0 0
        %837 = vperm.xlu0 %836, %v767
        %v838 = vpop.permute.xlu0 %837
        %841 = vset.pattern.permute.xlu0 0
        %842 = vperm.xlu0 %841, %v772
        %v843 = vpop.permute.xlu0 %842
        %846 = vset.pattern.permute.xlu0 0
        %847 = vperm.xlu0 %846, %v775
        %v848 = vpop.permute.xlu0 %847
        %851 = vset.pattern.permute.xlu0 0
        %852 = vperm.xlu0 %851, %v780
        %v853 = vpop.permute.xlu0 %852
        %856 = vset.pattern.permute.xlu0 0
        %857 = vperm.xlu0 %856, %v783
        %v858 = vpop.permute.xlu0 %857
        %861 = vset.pattern.permute.xlu0 0
        %862 = vperm.xlu0 %861, %v788
        %v863 = vpop.permute.xlu0 %862
        %866 = vset.pattern.permute.xlu0 0
        %867 = vperm.xlu0 %866, %v791
        %v868 = vpop.permute.xlu0 %867
        %871 = vset.pattern.permute.xlu0 0
        %872 = vperm.xlu0 %871, %v796
        %v873 = vpop.permute.xlu0 %872
        %876 = vset.pattern.permute.xlu0 0
        %877 = vperm.xlu0 %876, %v799
        %v878 = vpop.permute.xlu0 %877
        %881 = vset.pattern.permute.xlu0 0
        %882 = vperm.xlu0 %881, %v804
        %v883 = vpop.permute.xlu0 %882
        %886 = vset.pattern.permute.xlu0 0
        %887 = vperm.xlu0 %886, %v807
        %v888 = vpop.permute.xlu0 %887
        %v890 = vmul.f32 %v813, %v613
        %v891 = vmul.f32 %v818, %v614
        %v892 = vmul.f32 %v823, %v615
        %v893 = vmul.f32 %v828, %v616
        %v894 = vmul.f32 %v833, %v617
        %v895 = vmul.f32 %v838, %v618
        %v896 = vmul.f32 %v843, %v619
        %v897 = vmul.f32 %v848, %v620
        %v898 = vmul.f32 %v853, %v621
        %v899 = vmul.f32 %v858, %v622
        %v900 = vmul.f32 %v863, %v623
        %v901 = vmul.f32 %v868, %v624
        %v902 = vmul.f32 %v873, %v625
        %v903 = vmul.f32 %v878, %v626
        %v904 = vmul.f32 %v883, %v627
        %v905 = vmul.f32 %v888, %v628
        %v906 = vpack.c.bf16 %v891, %v890
        %v907 = vpack.c.bf16 %v893, %v892
        %v908 = vpack.c.bf16 %v895, %v894
        %v909 = vpack.c.bf16 %v897, %v896
        %v910 = vpack.c.bf16 %v899, %v898
        %v911 = vpack.c.bf16 %v901, %v900
        %v912 = vpack.c.bf16 %v903, %v902
        %v913 = vpack.c.bf16 %v905, %v904
        %v922 = vunpack.c.l.b16 %v906
        %v923 = vunpack.c.h.b16 %v906
        %v924 = vunpack.c.l.b16 %v907
        %v925 = vunpack.c.h.b16 %v907
        %v926 = vunpack.c.l.b16 %v908
        %v927 = vunpack.c.h.b16 %v908
        %v928 = vunpack.c.l.b16 %v909
        %v929 = vunpack.c.h.b16 %v909
        %v930 = vunpack.c.l.b16 %v910
        %v931 = vunpack.c.h.b16 %v910
        %v932 = vunpack.c.l.b16 %v911
        %v933 = vunpack.c.h.b16 %v911
        %v934 = vunpack.c.l.b16 %v912
        %v935 = vunpack.c.h.b16 %v912
        %v936 = vunpack.c.l.b16 %v913
        %v937 = vunpack.c.h.b16 %v913
        %v938 = vpack.c.b16 %v922, %v922
        %v939 = vpack.c.b16 %v923, %v923
        %v940 = vpack.c.b16 %v924, %v924
        %v941 = vpack.c.b16 %v925, %v925
        %v942 = vpack.c.b16 %v926, %v926
        %v943 = vpack.c.b16 %v927, %v927
        %v944 = vpack.c.b16 %v928, %v928
        %v945 = vpack.c.b16 %v929, %v929
        %v946 = vpack.c.b16 %v930, %v930
        %v947 = vpack.c.b16 %v931, %v931
        %v948 = vpack.c.b16 %v932, %v932
        %v949 = vpack.c.b16 %v933, %v933
        %v950 = vpack.c.b16 %v934, %v934
        %v951 = vpack.c.b16 %v935, %v935
        %v952 = vpack.c.b16 %v936, %v936
        %v953 = vpack.c.b16 %v937, %v937
        %vm970 = vcmask 519168
        %971 = vst.msk [vmem:[#allocation3] sm:$0xf] %vm970, %v938
        %972 = vst.msk [vmem:[#allocation3 + $0x8] sm:$0xf] %vm970, %v939
        %973 = vst.msk [vmem:[#allocation3 + $0x10] sm:$0xf] %vm970, %v940
        %974 = vst.msk [vmem:[#allocation3 + $0x18] sm:$0xf] %vm970, %v941
        %975 = vst.msk [vmem:[#allocation3 + $0x20] sm:$0xf] %vm970, %v942
        %976 = vst.msk [vmem:[#allocation3 + $0x28] sm:$0xf] %vm970, %v943
        %977 = vst.msk [vmem:[#allocation3 + $0x30] sm:$0xf] %vm970, %v944
        %978 = vst.msk [vmem:[#allocation3 + $0x38] sm:$0xf] %vm970, %v945
        %979 = vst.msk [vmem:[#allocation3 + $0x40] sm:$0xf] %vm970, %v946
        %980 = vst.msk [vmem:[#allocation3 + $0x48] sm:$0xf] %vm970, %v947
        %981 = vst.msk [vmem:[#allocation3 + $0x50] sm:$0xf] %vm970, %v948
        %982 = vst.msk [vmem:[#allocation3 + $0x58] sm:$0xf] %vm970, %v949
        %983 = vst.msk [vmem:[#allocation3 + $0x60] sm:$0xf] %vm970, %v950
        %984 = vst.msk [vmem:[#allocation3 + $0x68] sm:$0xf] %vm970, %v951
        %985 = vst.msk [vmem:[#allocation3 + $0x70] sm:$0xf] %vm970, %v952
        %986 = vst.msk [vmem:[#allocation3 + $0x78] sm:$0xf] %vm970, %v953
        %987 = vset.pattern.permute.xlu0 1
        %988 = vperm.xlu0 %987, %v748
        %v989 = vpop.permute.xlu0 %988
        %991 = vset.pattern.permute.xlu0 1
        %992 = vperm.xlu0 %991, %v751
        %v993 = vpop.permute.xlu0 %992
        %995 = vset.pattern.permute.xlu0 1
        %996 = vperm.xlu0 %995, %v756
        %v997 = vpop.permute.xlu0 %996
        %999 = vset.pattern.permute.xlu0 1
        %1000 = vperm.xlu0 %999, %v759
        %v1001 = vpop.permute.xlu0 %1000
        %1003 = vset.pattern.permute.xlu0 1
        %1004 = vperm.xlu0 %1003, %v764
        %v1005 = vpop.permute.xlu0 %1004
        %1007 = vset.pattern.permute.xlu0 1
        %1008 = vperm.xlu0 %1007, %v767
        %v1009 = vpop.permute.xlu0 %1008
        %1011 = vset.pattern.permute.xlu0 1
        %1012 = vperm.xlu0 %1011, %v772
        %v1013 = vpop.permute.xlu0 %1012
        %1015 = vset.pattern.permute.xlu0 1
        %1016 = vperm.xlu0 %1015, %v775
        %v1017 = vpop.permute.xlu0 %1016
        %1019 = vset.pattern.permute.xlu0 1
        %1020 = vperm.xlu0 %1019, %v780
        %v1021 = vpop.permute.xlu0 %1020
        %1023 = vset.pattern.permute.xlu0 1
        %1024 = vperm.xlu0 %1023, %v783
        %v1025 = vpop.permute.xlu0 %1024
        %1027 = vset.pattern.permute.xlu0 1
        %1028 = vperm.xlu0 %1027, %v788
        %v1029 = vpop.permute.xlu0 %1028
        %1031 = vset.pattern.permute.xlu0 1
        %1032 = vperm.xlu0 %1031, %v791
        %v1033 = vpop.permute.xlu0 %1032
        %1035 = vset.pattern.permute.xlu0 1
        %1036 = vperm.xlu0 %1035, %v796
        %v1037 = vpop.permute.xlu0 %1036
        %1039 = vset.pattern.permute.xlu0 1
        %1040 = vperm.xlu0 %1039, %v799
        %v1041 = vpop.permute.xlu0 %1040
        %1043 = vset.pattern.permute.xlu0 1
        %1044 = vperm.xlu0 %1043, %v804
        %v1045 = vpop.permute.xlu0 %1044
        %1047 = vset.pattern.permute.xlu0 1
        %1048 = vperm.xlu0 %1047, %v807
        %v1049 = vpop.permute.xlu0 %1048
        %v1051 = vmul.f32 %v989, %v613
        %v1052 = vmul.f32 %v993, %v614
        %v1053 = vmul.f32 %v997, %v615
        %v1054 = vmul.f32 %v1001, %v616
        %v1055 = vmul.f32 %v1005, %v617
        %v1056 = vmul.f32 %v1009, %v618
        %v1057 = vmul.f32 %v1013, %v619
        %v1058 = vmul.f32 %v1017, %v620
        %v1059 = vmul.f32 %v1021, %v621
        %v1060 = vmul.f32 %v1025, %v622
        %v1061 = vmul.f32 %v1029, %v623
        %v1062 = vmul.f32 %v1033, %v624
        %v1063 = vmul.f32 %v1037, %v625
        %v1064 = vmul.f32 %v1041, %v626
        %v1065 = vmul.f32 %v1045, %v627
        %v1066 = vmul.f32 %v1049, %v628
        %v1067 = vpack.c.bf16 %v1052, %v1051
        %v1068 = vpack.c.bf16 %v1054, %v1053
        %v1069 = vpack.c.bf16 %v1056, %v1055
        %v1070 = vpack.c.bf16 %v1058, %v1057
        %v1071 = vpack.c.bf16 %v1060, %v1059
        %v1072 = vpack.c.bf16 %v1062, %v1061
        %v1073 = vpack.c.bf16 %v1064, %v1063
        %v1074 = vpack.c.bf16 %v1066, %v1065
        %v1083 = vunpack.c.l.b16 %v1067
        %v1084 = vunpack.c.h.b16 %v1067
        %v1085 = vunpack.c.l.b16 %v1068
        %v1086 = vunpack.c.h.b16 %v1068
        %v1087 = vunpack.c.l.b16 %v1069
        %v1088 = vunpack.c.h.b16 %v1069
        %v1089 = vunpack.c.l.b16 %v1070
        %v1090 = vunpack.c.h.b16 %v1070
        %v1091 = vunpack.c.l.b16 %v1071
        %v1092 = vunpack.c.h.b16 %v1071
        %v1093 = vunpack.c.l.b16 %v1072
        %v1094 = vunpack.c.h.b16 %v1072
        %v1095 = vunpack.c.l.b16 %v1073
        %v1096 = vunpack.c.h.b16 %v1073
        %v1097 = vunpack.c.l.b16 %v1074
        %v1098 = vunpack.c.h.b16 %v1074
        %v1099 = vpack.c.b16 %v1083, %v1083
        %v1100 = vpack.c.b16 %v1084, %v1084
        %v1101 = vpack.c.b16 %v1085, %v1085
        %v1102 = vpack.c.b16 %v1086, %v1086
        %v1103 = vpack.c.b16 %v1087, %v1087
        %v1104 = vpack.c.b16 %v1088, %v1088
        %v1105 = vpack.c.b16 %v1089, %v1089
        %v1106 = vpack.c.b16 %v1090, %v1090
        %v1107 = vpack.c.b16 %v1091, %v1091
        %v1108 = vpack.c.b16 %v1092, %v1092
        %v1109 = vpack.c.b16 %v1093, %v1093
        %v1110 = vpack.c.b16 %v1094, %v1094
        %v1111 = vpack.c.b16 %v1095, %v1095
        %v1112 = vpack.c.b16 %v1096, %v1096
        %v1113 = vpack.c.b16 %v1097, %v1097
        %v1114 = vpack.c.b16 %v1098, %v1098
        %1115 = vrot.lane.b32.xlu0 %v1099, 64
        %v1116 = vpop.permute.xlu0 %1115
        %1117 = vrot.lane.b32.xlu0 %v1100, 64
        %v1118 = vpop.permute.xlu0 %1117
        %1119 = vrot.lane.b32.xlu0 %v1101, 64
        %v1120 = vpop.permute.xlu0 %1119
        %1121 = vrot.lane.b32.xlu0 %v1102, 64
        %v1122 = vpop.permute.xlu0 %1121
        %1123 = vrot.lane.b32.xlu0 %v1103, 64
        %v1124 = vpop.permute.xlu0 %1123
        %1125 = vrot.lane.b32.xlu0 %v1104, 64
        %v1126 = vpop.permute.xlu0 %1125
        %1127 = vrot.lane.b32.xlu0 %v1105, 64
        %v1128 = vpop.permute.xlu0 %1127
        %1129 = vrot.lane.b32.xlu0 %v1106, 64
        %v1130 = vpop.permute.xlu0 %1129
        %1131 = vrot.lane.b32.xlu0 %v1107, 64
        %v1132 = vpop.permute.xlu0 %1131
        %1133 = vrot.lane.b32.xlu0 %v1108, 64
        %v1134 = vpop.permute.xlu0 %1133
        %1135 = vrot.lane.b32.xlu0 %v1109, 64
        %v1136 = vpop.permute.xlu0 %1135
        %1137 = vrot.lane.b32.xlu0 %v1110, 64
        %v1138 = vpop.permute.xlu0 %1137
        %1139 = vrot.lane.b32.xlu0 %v1111, 64
        %v1140 = vpop.permute.xlu0 %1139
        %1141 = vrot.lane.b32.xlu0 %v1112, 64
        %v1142 = vpop.permute.xlu0 %1141
        %1143 = vrot.lane.b32.xlu0 %v1113, 64
        %v1144 = vpop.permute.xlu0 %1143
        %1145 = vrot.lane.b32.xlu0 %v1114, 64
        %v1146 = vpop.permute.xlu0 %1145
        %vm1163 = vcmask 1043968
        %1164 = vst.msk [vmem:[#allocation3] sm:$0xf] %vm1163, %v1116
        %1165 = vst.msk [vmem:[#allocation3 + $0x8] sm:$0xf] %vm1163, %v1118
        %1166 = vst.msk [vmem:[#allocation3 + $0x10] sm:$0xf] %vm1163, %v1120
        %1167 = vst.msk [vmem:[#allocation3 + $0x18] sm:$0xf] %vm1163, %v1122
        %1168 = vst.msk [vmem:[#allocation3 + $0x20] sm:$0xf] %vm1163, %v1124
        %1169 = vst.msk [vmem:[#allocation3 + $0x28] sm:$0xf] %vm1163, %v1126
        %1170 = vst.msk [vmem:[#allocation3 + $0x30] sm:$0xf] %vm1163, %v1128
        %1171 = vst.msk [vmem:[#allocation3 + $0x38] sm:$0xf] %vm1163, %v1130
        %1172 = vst.msk [vmem:[#allocation3 + $0x40] sm:$0xf] %vm1163, %v1132
        %1173 = vst.msk [vmem:[#allocation3 + $0x48] sm:$0xf] %vm1163, %v1134
        %1174 = vst.msk [vmem:[#allocation3 + $0x50] sm:$0xf] %vm1163, %v1136
        %1175 = vst.msk [vmem:[#allocation3 + $0x58] sm:$0xf] %vm1163, %v1138
        %1176 = vst.msk [vmem:[#allocation3 + $0x60] sm:$0xf] %vm1163, %v1140
        %1177 = vst.msk [vmem:[#allocation3 + $0x68] sm:$0xf] %vm1163, %v1142
        %1178 = vst.msk [vmem:[#allocation3 + $0x70] sm:$0xf] %vm1163, %v1144
        %1179 = vst.msk [vmem:[#allocation3 + $0x78] sm:$0xf] %vm1163, %v1146
        %1180 = vset.pattern.permute.xlu0 2
        %1181 = vperm.xlu0 %1180, %v748
        %v1182 = vpop.permute.xlu0 %1181
        %1184 = vset.pattern.permute.xlu0 2
        %1185 = vperm.xlu0 %1184, %v751
        %v1186 = vpop.permute.xlu0 %1185
        %1188 = vset.pattern.permute.xlu0 2
        %1189 = vperm.xlu0 %1188, %v756
        %v1190 = vpop.permute.xlu0 %1189
        %1192 = vset.pattern.permute.xlu0 2
        %1193 = vperm.xlu0 %1192, %v759
        %v1194 = vpop.permute.xlu0 %1193
        %1196 = vset.pattern.permute.xlu0 2
        %1197 = vperm.xlu0 %1196, %v764
        %v1198 = vpop.permute.xlu0 %1197
        %1200 = vset.pattern.permute.xlu0 2
        %1201 = vperm.xlu0 %1200, %v767
        %v1202 = vpop.permute.xlu0 %1201
        %1204 = vset.pattern.permute.xlu0 2
        %1205 = vperm.xlu0 %1204, %v772
        %v1206 = vpop.permute.xlu0 %1205
        %1208 = vset.pattern.permute.xlu0 2
        %1209 = vperm.xlu0 %1208, %v775
        %v1210 = vpop.permute.xlu0 %1209
        %1212 = vset.pattern.permute.xlu0 2
        %1213 = vperm.xlu0 %1212, %v780
        %v1214 = vpop.permute.xlu0 %1213
        %1216 = vset.pattern.permute.xlu0 2
        %1217 = vperm.xlu0 %1216, %v783
        %v1218 = vpop.permute.xlu0 %1217
        %1220 = vset.pattern.permute.xlu0 2
        %1221 = vperm.xlu0 %1220, %v788
        %v1222 = vpop.permute.xlu0 %1221
        %1224 = vset.pattern.permute.xlu0 2
        %1225 = vperm.xlu0 %1224, %v791
        %v1226 = vpop.permute.xlu0 %1225
        %1228 = vset.pattern.permute.xlu0 2
        %1229 = vperm.xlu0 %1228, %v796
        %v1230 = vpop.permute.xlu0 %1229
        %1232 = vset.pattern.permute.xlu0 2
        %1233 = vperm.xlu0 %1232, %v799
        %v1234 = vpop.permute.xlu0 %1233
        %1236 = vset.pattern.permute.xlu0 2
        %1237 = vperm.xlu0 %1236, %v804
        %v1238 = vpop.permute.xlu0 %1237
        %1240 = vset.pattern.permute.xlu0 2
        %1241 = vperm.xlu0 %1240, %v807
        %v1242 = vpop.permute.xlu0 %1241
        %v1244 = vmul.f32 %v1182, %v613
        %v1245 = vmul.f32 %v1186, %v614
        %v1246 = vmul.f32 %v1190, %v615
        %v1247 = vmul.f32 %v1194, %v616
        %v1248 = vmul.f32 %v1198, %v617
        %v1249 = vmul.f32 %v1202, %v618
        %v1250 = vmul.f32 %v1206, %v619
        %v1251 = vmul.f32 %v1210, %v620
        %v1252 = vmul.f32 %v1214, %v621
        %v1253 = vmul.f32 %v1218, %v622
        %v1254 = vmul.f32 %v1222, %v623
        %v1255 = vmul.f32 %v1226, %v624
        %v1256 = vmul.f32 %v1230, %v625
        %v1257 = vmul.f32 %v1234, %v626
        %v1258 = vmul.f32 %v1238, %v627
        %v1259 = vmul.f32 %v1242, %v628
        %v1260 = vpack.c.bf16 %v1245, %v1244
        %v1261 = vpack.c.bf16 %v1247, %v1246
        %v1262 = vpack.c.bf16 %v1249, %v1248
        %v1263 = vpack.c.bf16 %v1251, %v1250
        %v1264 = vpack.c.bf16 %v1253, %v1252
        %v1265 = vpack.c.bf16 %v1255, %v1254
        %v1266 = vpack.c.bf16 %v1257, %v1256
        %v1267 = vpack.c.bf16 %v1259, %v1258
        %v1276 = vunpack.c.l.b16 %v1260
        %v1277 = vunpack.c.h.b16 %v1260
        %v1278 = vunpack.c.l.b16 %v1261
        %v1279 = vunpack.c.h.b16 %v1261
        %v1280 = vunpack.c.l.b16 %v1262
        %v1281 = vunpack.c.h.b16 %v1262
        %v1282 = vunpack.c.l.b16 %v1263
        %v1283 = vunpack.c.h.b16 %v1263
        %v1284 = vunpack.c.l.b16 %v1264
        %v1285 = vunpack.c.h.b16 %v1264
        %v1286 = vunpack.c.l.b16 %v1265
        %v1287 = vunpack.c.h.b16 %v1265
        %v1288 = vunpack.c.l.b16 %v1266
        %v1289 = vunpack.c.h.b16 %v1266
        %v1290 = vunpack.c.l.b16 %v1267
        %v1291 = vunpack.c.h.b16 %v1267
        %v1292 = vpack.c.b16 %v1276, %v1276
        %v1293 = vpack.c.b16 %v1277, %v1277
        %v1294 = vpack.c.b16 %v1278, %v1278
        %v1295 = vpack.c.b16 %v1279, %v1279
        %v1296 = vpack.c.b16 %v1280, %v1280
        %v1297 = vpack.c.b16 %v1281, %v1281
        %v1298 = vpack.c.b16 %v1282, %v1282
        %v1299 = vpack.c.b16 %v1283, %v1283
        %v1300 = vpack.c.b16 %v1284, %v1284
        %v1301 = vpack.c.b16 %v1285, %v1285
        %v1302 = vpack.c.b16 %v1286, %v1286
        %v1303 = vpack.c.b16 %v1287, %v1287
        %v1304 = vpack.c.b16 %v1288, %v1288
        %v1305 = vpack.c.b16 %v1289, %v1289
        %v1306 = vpack.c.b16 %v1290, %v1290
        %v1307 = vpack.c.b16 %v1291, %v1291
        %1324 = vst.msk [vmem:[#allocation3 + $0x4] sm:$0xf] %vm970, %v1292
        %1325 = vst.msk [vmem:[#allocation3 + $0xc] sm:$0xf] %vm970, %v1293
        %1326 = vst.msk [vmem:[#allocation3 + $0x14] sm:$0xf] %vm970, %v1294
        %1327 = vst.msk [vmem:[#allocation3 + $0x1c] sm:$0xf] %vm970, %v1295
        %1328 = vst.msk [vmem:[#allocation3 + $0x24] sm:$0xf] %vm970, %v1296
        %1329 = vst.msk [vmem:[#allocation3 + $0x2c] sm:$0xf] %vm970, %v1297
        %1330 = vst.msk [vmem:[#allocation3 + $0x34] sm:$0xf] %vm970, %v1298
        %1331 = vst.msk [vmem:[#allocation3 + $0x3c] sm:$0xf] %vm970, %v1299
        %1332 = vst.msk [vmem:[#allocation3 + $0x44] sm:$0xf] %vm970, %v1300
        %1333 = vst.msk [vmem:[#allocation3 + $0x4c] sm:$0xf] %vm970, %v1301
        %1334 = vst.msk [vmem:[#allocation3 + $0x54] sm:$0xf] %vm970, %v1302
        %1335 = vst.msk [vmem:[#allocation3 + $0x5c] sm:$0xf] %vm970, %v1303
        %1336 = vst.msk [vmem:[#allocation3 + $0x64] sm:$0xf] %vm970, %v1304
        %1337 = vst.msk [vmem:[#allocation3 + $0x6c] sm:$0xf] %vm970, %v1305
        %1338 = vst.msk [vmem:[#allocation3 + $0x74] sm:$0xf] %vm970, %v1306
        %1339 = vst.msk [vmem:[#allocation3 + $0x7c] sm:$0xf] %vm970, %v1307
        %1340 = vset.pattern.permute.xlu0 3
        %1341 = vperm.xlu0 %1340, %v748
        %v1342 = vpop.permute.xlu0 %1341
        %1344 = vset.pattern.permute.xlu0 3
        %1345 = vperm.xlu0 %1344, %v751
        %v1346 = vpop.permute.xlu0 %1345
        %1348 = vset.pattern.permute.xlu0 3
        %1349 = vperm.xlu0 %1348, %v756
        %v1350 = vpop.permute.xlu0 %1349
        %1352 = vset.pattern.permute.xlu0 3
        %1353 = vperm.xlu0 %1352, %v759
        %v1354 = vpop.permute.xlu0 %1353
        %1356 = vset.pattern.permute.xlu0 3
        %1357 = vperm.xlu0 %1356, %v764
        %v1358 = vpop.permute.xlu0 %1357
        %1360 = vset.pattern.permute.xlu0 3
        %1361 = vperm.xlu0 %1360, %v767
        %v1362 = vpop.permute.xlu0 %1361
        %1364 = vset.pattern.permute.xlu0 3
        %1365 = vperm.xlu0 %1364, %v772
        %v1366 = vpop.permute.xlu0 %1365
        %1368 = vset.pattern.permute.xlu0 3
        %1369 = vperm.xlu0 %1368, %v775
        %v1370 = vpop.permute.xlu0 %1369
        %1372 = vset.pattern.permute.xlu0 3
        %1373 = vperm.xlu0 %1372, %v780
        %v1374 = vpop.permute.xlu0 %1373
        %1376 = vset.pattern.permute.xlu0 3
        %1377 = vperm.xlu0 %1376, %v783
        %v1378 = vpop.permute.xlu0 %1377
        %1380 = vset.pattern.permute.xlu0 3
        %1381 = vperm.xlu0 %1380, %v788
        %v1382 = vpop.permute.xlu0 %1381
        %1384 = vset.pattern.permute.xlu0 3
        %1385 = vperm.xlu0 %1384, %v791
        %v1386 = vpop.permute.xlu0 %1385
        %1388 = vset.pattern.permute.xlu0 3
        %1389 = vperm.xlu0 %1388, %v796
        %v1390 = vpop.permute.xlu0 %1389
        %1392 = vset.pattern.permute.xlu0 3
        %1393 = vperm.xlu0 %1392, %v799
        %v1394 = vpop.permute.xlu0 %1393
        %1396 = vset.pattern.permute.xlu0 3
        %1397 = vperm.xlu0 %1396, %v804
        %v1398 = vpop.permute.xlu0 %1397
        %1400 = vset.pattern.permute.xlu0 3
        %1401 = vperm.xlu0 %1400, %v807
        %v1402 = vpop.permute.xlu0 %1401
        %v1404 = vmul.f32 %v1342, %v613
        %v1405 = vmul.f32 %v1346, %v614
        %v1406 = vmul.f32 %v1350, %v615
        %v1407 = vmul.f32 %v1354, %v616
        %v1408 = vmul.f32 %v1358, %v617
        %v1409 = vmul.f32 %v1362, %v618
        %v1410 = vmul.f32 %v1366, %v619
        %v1411 = vmul.f32 %v1370, %v620
        %v1412 = vmul.f32 %v1374, %v621
        %v1413 = vmul.f32 %v1378, %v622
        %v1414 = vmul.f32 %v1382, %v623
        %v1415 = vmul.f32 %v1386, %v624
        %v1416 = vmul.f32 %v1390, %v625
        %v1417 = vmul.f32 %v1394, %v626
        %v1418 = vmul.f32 %v1398, %v627
        %v1419 = vmul.f32 %v1402, %v628
        %v1420 = vpack.c.bf16 %v1405, %v1404
        %v1421 = vpack.c.bf16 %v1407, %v1406
        %v1422 = vpack.c.bf16 %v1409, %v1408
        %v1423 = vpack.c.bf16 %v1411, %v1410
        %v1424 = vpack.c.bf16 %v1413, %v1412
        %v1425 = vpack.c.bf16 %v1415, %v1414
        %v1426 = vpack.c.bf16 %v1417, %v1416
        %v1427 = vpack.c.bf16 %v1419, %v1418
        %v1436 = vunpack.c.l.b16 %v1420
        %v1437 = vunpack.c.h.b16 %v1420
        %v1438 = vunpack.c.l.b16 %v1421
        %v1439 = vunpack.c.h.b16 %v1421
        %v1440 = vunpack.c.l.b16 %v1422
        %v1441 = vunpack.c.h.b16 %v1422
        %v1442 = vunpack.c.l.b16 %v1423
        %v1443 = vunpack.c.h.b16 %v1423
        %v1444 = vunpack.c.l.b16 %v1424
        %v1445 = vunpack.c.h.b16 %v1424
        %v1446 = vunpack.c.l.b16 %v1425
        %v1447 = vunpack.c.h.b16 %v1425
        %v1448 = vunpack.c.l.b16 %v1426
        %v1449 = vunpack.c.h.b16 %v1426
        %v1450 = vunpack.c.l.b16 %v1427
        %v1451 = vunpack.c.h.b16 %v1427
        %v1452 = vpack.c.b16 %v1436, %v1436
        %v1453 = vpack.c.b16 %v1437, %v1437
        %v1454 = vpack.c.b16 %v1438, %v1438
        %v1455 = vpack.c.b16 %v1439, %v1439
        %v1456 = vpack.c.b16 %v1440, %v1440
        %v1457 = vpack.c.b16 %v1441, %v1441
        %v1458 = vpack.c.b16 %v1442, %v1442
        %v1459 = vpack.c.b16 %v1443, %v1443
        %v1460 = vpack.c.b16 %v1444, %v1444
        %v1461 = vpack.c.b16 %v1445, %v1445
        %v1462 = vpack.c.b16 %v1446, %v1446
        %v1463 = vpack.c.b16 %v1447, %v1447
        %v1464 = vpack.c.b16 %v1448, %v1448
        %v1465 = vpack.c.b16 %v1449, %v1449
        %v1466 = vpack.c.b16 %v1450, %v1450
        %v1467 = vpack.c.b16 %v1451, %v1451
        %1468 = vrot.lane.b32.xlu0 %v1452, 64
        %v1469 = vpop.permute.xlu0 %1468
        %1470 = vrot.lane.b32.xlu0 %v1453, 64
        %v1471 = vpop.permute.xlu0 %1470
        %1472 = vrot.lane.b32.xlu0 %v1454, 64
        %v1473 = vpop.permute.xlu0 %1472
        %1474 = vrot.lane.b32.xlu0 %v1455, 64
        %v1475 = vpop.permute.xlu0 %1474
        %1476 = vrot.lane.b32.xlu0 %v1456, 64
        %v1477 = vpop.permute.xlu0 %1476
        %1478 = vrot.lane.b32.xlu0 %v1457, 64
        %v1479 = vpop.permute.xlu0 %1478
        %1480 = vrot.lane.b32.xlu0 %v1458, 64
        %v1481 = vpop.permute.xlu0 %1480
        %1482 = vrot.lane.b32.xlu0 %v1459, 64
        %v1483 = vpop.permute.xlu0 %1482
        %1484 = vrot.lane.b32.xlu0 %v1460, 64
        %v1485 = vpop.permute.xlu0 %1484
        %1486 = vrot.lane.b32.xlu0 %v1461, 64
        %v1487 = vpop.permute.xlu0 %1486
        %1488 = vrot.lane.b32.xlu0 %v1462, 64
        %v1489 = vpop.permute.xlu0 %1488
        %1490 = vrot.lane.b32.xlu0 %v1463, 64
        %v1491 = vpop.permute.xlu0 %1490
        %1492 = vrot.lane.b32.xlu0 %v1464, 64
        %v1493 = vpop.permute.xlu0 %1492
        %1494 = vrot.lane.b32.xlu0 %v1465, 64
        %v1495 = vpop.permute.xlu0 %1494
        %1496 = vrot.lane.b32.xlu0 %v1466, 64
        %v1497 = vpop.permute.xlu0 %1496
        %1498 = vrot.lane.b32.xlu0 %v1467, 64
        %v1499 = vpop.permute.xlu0 %1498
        %1516 = vst.msk [vmem:[#allocation3 + $0x4] sm:$0xf] %vm1163, %v1469
        %1517 = vst.msk [vmem:[#allocation3 + $0xc] sm:$0xf] %vm1163, %v1471
        %1518 = vst.msk [vmem:[#allocation3 + $0x14] sm:$0xf] %vm1163, %v1473
        %1519 = vst.msk [vmem:[#allocation3 + $0x1c] sm:$0xf] %vm1163, %v1475
        %1520 = vst.msk [vmem:[#allocation3 + $0x24] sm:$0xf] %vm1163, %v1477
        %1521 = vst.msk [vmem:[#allocation3 + $0x2c] sm:$0xf] %vm1163, %v1479
        %1522 = vst.msk [vmem:[#allocation3 + $0x34] sm:$0xf] %vm1163, %v1481
        %1523 = vst.msk [vmem:[#allocation3 + $0x3c] sm:$0xf] %vm1163, %v1483
        %1524 = vst.msk [vmem:[#allocation3 + $0x44] sm:$0xf] %vm1163, %v1485
        %1525 = vst.msk [vmem:[#allocation3 + $0x4c] sm:$0xf] %vm1163, %v1487
        %1526 = vst.msk [vmem:[#allocation3 + $0x54] sm:$0xf] %vm1163, %v1489
        %1527 = vst.msk [vmem:[#allocation3 + $0x5c] sm:$0xf] %vm1163, %v1491
        %1528 = vst.msk [vmem:[#allocation3 + $0x64] sm:$0xf] %vm1163, %v1493
        %1529 = vst.msk [vmem:[#allocation3 + $0x6c] sm:$0xf] %vm1163, %v1495
        %1530 = vst.msk [vmem:[#allocation3 + $0x74] sm:$0xf] %vm1163, %v1497
        %1531 = vst.msk [vmem:[#allocation3 + $0x7c] sm:$0xf] %vm1163, %v1499
        %v1532 = vld [vmem:[#allocation3] sm:$0xff]
        %v1533 = vld [vmem:[#allocation3 + $0x8] sm:$0xff]
        %v1534 = vld [vmem:[#allocation3 + $0x10] sm:$0xff]
        %v1535 = vld [vmem:[#allocation3 + $0x18] sm:$0xff]
        %v1536 = vld [vmem:[#allocation3 + $0x20] sm:$0xff]
        %v1537 = vld [vmem:[#allocation3 + $0x28] sm:$0xff]
        %v1538 = vld [vmem:[#allocation3 + $0x30] sm:$0xff]
        %v1539 = vld [vmem:[#allocation3 + $0x38] sm:$0xff]
        %v1540 = vld [vmem:[#allocation3 + $0x40] sm:$0xff]
        %v1541 = vld [vmem:[#allocation3 + $0x48] sm:$0xff]
        %v1542 = vld [vmem:[#allocation3 + $0x50] sm:$0xff]
        %v1543 = vld [vmem:[#allocation3 + $0x58] sm:$0xff]
        %v1544 = vld [vmem:[#allocation3 + $0x60] sm:$0xff]
        %v1545 = vld [vmem:[#allocation3 + $0x68] sm:$0xff]
        %v1546 = vld [vmem:[#allocation3 + $0x70] sm:$0xff]
        %v1547 = vld [vmem:[#allocation3 + $0x78] sm:$0xff]
        %v1548 = vld [vmem:[%s6] sm:$0xf]
        %v1549 = vld [vmem:[%s6 + $0x4] sm:$0xf]
        %v1550 = vld [vmem:[%s6 + $0x8] sm:$0xf]
        %v1551 = vld [vmem:[%s6 + $0xc] sm:$0xf]
        %v1552 = vld [vmem:[%s6 + $0x10] sm:$0xf]
        %v1553 = vld [vmem:[%s6 + $0x14] sm:$0xf]
        %v1554 = vld [vmem:[%s6 + $0x18] sm:$0xf]
        %v1555 = vld [vmem:[%s6 + $0x1c] sm:$0xf]
        %v1556 = vld [vmem:[%s6 + $0x20] sm:$0xf]
        %v1557 = vld [vmem:[%s6 + $0x24] sm:$0xf]
        %v1558 = vld [vmem:[%s6 + $0x28] sm:$0xf]
        %v1559 = vld [vmem:[%s6 + $0x2c] sm:$0xf]
        %v1560 = vld [vmem:[%s6 + $0x30] sm:$0xf]
        %v1561 = vld [vmem:[%s6 + $0x34] sm:$0xf]
        %v1562 = vld [vmem:[%s6 + $0x38] sm:$0xf]
        %v1563 = vld [vmem:[%s6 + $0x3c] sm:$0xf]
        %v1564 = vld [vmem:[%s6 + $0x40] sm:$0xf]
        %v1565 = vld [vmem:[%s6 + $0x44] sm:$0xf]
        %v1566 = vld [vmem:[%s6 + $0x48] sm:$0xf]
        %v1567 = vld [vmem:[%s6 + $0x4c] sm:$0xf]
        %v1568 = vld [vmem:[%s6 + $0x50] sm:$0xf]
        %v1569 = vld [vmem:[%s6 + $0x54] sm:$0xf]
        %v1570 = vld [vmem:[%s6 + $0x58] sm:$0xf]
        %v1571 = vld [vmem:[%s6 + $0x5c] sm:$0xf]
        %v1572 = vld [vmem:[%s6 + $0x60] sm:$0xf]
        %v1573 = vld [vmem:[%s6 + $0x64] sm:$0xf]
        %v1574 = vld [vmem:[%s6 + $0x68] sm:$0xf]
        %v1575 = vld [vmem:[%s6 + $0x6c] sm:$0xf]
        %v1576 = vld [vmem:[%s6 + $0x70] sm:$0xf]
        %v1577 = vld [vmem:[%s6 + $0x74] sm:$0xf]
        %v1578 = vld [vmem:[%s6 + $0x78] sm:$0xf]
        %v1579 = vld [vmem:[%s6 + $0x7c] sm:$0xf]
        %v1596 = vunpack.c.l.b16 %v1532
        %v1597 = vunpack.c.h.b16 %v1532
        %v1598 = vunpack.c.l.b16 %v1533
        %v1599 = vunpack.c.h.b16 %v1533
        %v1600 = vunpack.c.l.b16 %v1534
        %v1601 = vunpack.c.h.b16 %v1534
        %v1602 = vunpack.c.l.b16 %v1535
        %v1603 = vunpack.c.h.b16 %v1535
        %v1604 = vunpack.c.l.b16 %v1536
        %v1605 = vunpack.c.h.b16 %v1536
        %v1606 = vunpack.c.l.b16 %v1537
        %v1607 = vunpack.c.h.b16 %v1537
        %v1608 = vunpack.c.l.b16 %v1538
        %v1609 = vunpack.c.h.b16 %v1538
        %v1610 = vunpack.c.l.b16 %v1539
        %v1611 = vunpack.c.h.b16 %v1539
        %v1612 = vunpack.c.l.b16 %v1540
        %v1613 = vunpack.c.h.b16 %v1540
        %v1614 = vunpack.c.l.b16 %v1541
        %v1615 = vunpack.c.h.b16 %v1541
        %v1616 = vunpack.c.l.b16 %v1542
        %v1617 = vunpack.c.h.b16 %v1542
        %v1618 = vunpack.c.l.b16 %v1543
        %v1619 = vunpack.c.h.b16 %v1543
        %v1620 = vunpack.c.l.b16 %v1544
        %v1621 = vunpack.c.h.b16 %v1544
        %v1622 = vunpack.c.l.b16 %v1545
        %v1623 = vunpack.c.h.b16 %v1545
        %v1624 = vunpack.c.l.b16 %v1546
        %v1625 = vunpack.c.h.b16 %v1546
        %v1626 = vunpack.c.l.b16 %v1547
        %v1627 = vunpack.c.h.b16 %v1547
        %v1628 = vpack.c.b16 %v1598, %v1596
        %v1629 = vpack.c.b16 %v1599, %v1597
        %v1630 = vpack.c.b16 %v1602, %v1600
        %v1631 = vpack.c.b16 %v1603, %v1601
        %v1632 = vpack.c.b16 %v1606, %v1604
        %v1633 = vpack.c.b16 %v1607, %v1605
        %v1634 = vpack.c.b16 %v1610, %v1608
        %v1635 = vpack.c.b16 %v1611, %v1609
        %v1636 = vpack.c.b16 %v1614, %v1612
        %v1637 = vpack.c.b16 %v1615, %v1613
        %v1638 = vpack.c.b16 %v1618, %v1616
        %v1639 = vpack.c.b16 %v1619, %v1617
        %v1640 = vpack.c.b16 %v1622, %v1620
        %v1641 = vpack.c.b16 %v1623, %v1621
        %v1642 = vpack.c.b16 %v1626, %v1624
        %v1643 = vpack.c.b16 %v1627, %v1625
        %v1692 = vunpack.c.l.b16 %v1548
        %v1693 = vunpack.c.l.b16 %v1549
        %v1694 = vunpack.c.l.b16 %v1550
        %v1695 = vunpack.c.l.b16 %v1551
        %v1696 = vunpack.c.l.b16 %v1552
        %v1697 = vunpack.c.l.b16 %v1553
        %v1698 = vunpack.c.l.b16 %v1554
        %v1699 = vunpack.c.l.b16 %v1555
        %v1700 = vunpack.c.l.b16 %v1556
        %v1701 = vunpack.c.l.b16 %v1557
        %v1702 = vunpack.c.l.b16 %v1558
        %v1703 = vunpack.c.l.b16 %v1559
        %v1704 = vunpack.c.l.b16 %v1560
        %v1705 = vunpack.c.l.b16 %v1561
        %v1706 = vunpack.c.l.b16 %v1562
        %v1707 = vunpack.c.l.b16 %v1563
        %v1708 = vunpack.c.l.b16 %v1564
        %v1709 = vunpack.c.l.b16 %v1565
        %v1710 = vunpack.c.l.b16 %v1566
        %v1711 = vunpack.c.l.b16 %v1567
        %v1712 = vunpack.c.l.b16 %v1568
        %v1713 = vunpack.c.l.b16 %v1569
        %v1714 = vunpack.c.l.b16 %v1570
        %v1715 = vunpack.c.l.b16 %v1571
        %v1716 = vunpack.c.l.b16 %v1572
        %v1717 = vunpack.c.l.b16 %v1573
        %v1718 = vunpack.c.l.b16 %v1574
        %v1719 = vunpack.c.l.b16 %v1575
        %v1720 = vunpack.c.l.b16 %v1576
        %v1721 = vunpack.c.l.b16 %v1577
        %v1722 = vunpack.c.l.b16 %v1578
        %v1723 = vunpack.c.l.b16 %v1579
        %v1724 = vpack.c.b16 %v1693, %v1692
        %v1725 = vpack.c.b16 %v1695, %v1694
        %v1726 = vpack.c.b16 %v1697, %v1696
        %v1727 = vpack.c.b16 %v1699, %v1698
        %v1728 = vpack.c.b16 %v1701, %v1700
        %v1729 = vpack.c.b16 %v1703, %v1702
        %v1730 = vpack.c.b16 %v1705, %v1704
        %v1731 = vpack.c.b16 %v1707, %v1706
        %v1732 = vpack.c.b16 %v1709, %v1708
        %v1733 = vpack.c.b16 %v1711, %v1710
        %v1734 = vpack.c.b16 %v1713, %v1712
        %v1735 = vpack.c.b16 %v1715, %v1714
        %v1736 = vpack.c.b16 %v1717, %v1716
        %v1737 = vpack.c.b16 %v1719, %v1718
        %v1738 = vpack.c.b16 %v1721, %v1720
        %v1739 = vpack.c.b16 %v1723, %v1722
        %1756 = vmatprep.subr.bf16.mxu0 0
        %1757 = vmatpush1.bf16.msra.mxu0 %v1731
        %1758 = vmatprep.subr.bf16.mxu0 0
        %1759 = vmatpush1.bf16.msra.mxu0 %v1730
        %1760 = vmatprep.subr.bf16.mxu0 0
        %1761 = vmatpush1.bf16.msra.mxu0 %v1729
        %1762 = vmatprep.subr.bf16.mxu0 0
        %1763 = vmatpush1.bf16.msra.mxu0 %v1728
        %1764 = vmatprep.subr.bf16.mxu0 0
        %1765 = vmatpush1.bf16.msra.mxu0 %v1727
        %1766 = vmatprep.subr.bf16.mxu0 0
        %1767 = vmatpush1.bf16.msra.mxu0 %v1726
        %1768 = vmatprep.subr.bf16.mxu0 0
        %1769 = vmatpush1.bf16.msra.mxu0 %v1725
        %1770 = vmatprep.subr.bf16.mxu0 0
        %1771 = vmatpush1.bf16.msra.mxu0 %v1724
        %1772 = vmatprep.subr.bf16.mxu0 0
        %1773 = vmatpush2.bf16.msra.mxu0 %v1739
        %1774 = vmatprep.subr.bf16.mxu0 0
        %1775 = vmatpush2.bf16.msra.mxu0 %v1738
        %1776 = vmatprep.subr.bf16.mxu0 0
        %1777 = vmatpush2.bf16.msra.mxu0 %v1737
        %1778 = vmatprep.subr.bf16.mxu0 0
        %1779 = vmatpush2.bf16.msra.mxu0 %v1736
        %1780 = vmatprep.subr.bf16.mxu0 0
        %1781 = vmatpush2.bf16.msra.mxu0 %v1735
        %1782 = vmatprep.subr.bf16.mxu0 0
        %1783 = vmatpush2.bf16.msra.mxu0 %v1734
        %1784 = vmatprep.subr.bf16.mxu0 0
        %1785 = vmatpush2.bf16.msra.mxu0 %v1733
        %1786 = vmatprep.subr.bf16.mxu0 0
        %1787 = vmatpush2.bf16.msra.mxu0 %v1732
        %1788 = vmatprep.mubr.bf16.mxu0 %v1629
        %1789 = vmatmul.mubr.bf16.gmra.mxu0 %v1628
        %v1790 = vpop.f32.mrf.mxu0
        %v1791 = vadd.f32 0.0, %v1790
        %v1792 = vpop.f32.mrf.mxu0
        %v1793 = vpop.f32.mrf.mxu0
        %v1794 = vadd.f32 0.0, %v1793
        %v1795 = vpop.f32.mrf.mxu0
        %1796 = vmatprep.mubr.bf16.mxu0 %v1631
        %1797 = vmatmul.mubr.bf16.gmra.mxu0 %v1630
        %v1798 = vpop.f32.mrf.mxu0
        %v1799 = vadd.f32 0.0, %v1798
        %v1800 = vpop.f32.mrf.mxu0
        %v1801 = vpop.f32.mrf.mxu0
        %v1802 = vadd.f32 0.0, %v1801
        %v1803 = vpop.f32.mrf.mxu0
        %1804 = vmatprep.mubr.bf16.mxu0 %v1633
        %1805 = vmatmul.mubr.bf16.gmra.mxu0 %v1632
        %v1806 = vpop.f32.mrf.mxu0
        %v1807 = vadd.f32 0.0, %v1806
        %v1808 = vpop.f32.mrf.mxu0
        %v1809 = vpop.f32.mrf.mxu0
        %v1810 = vadd.f32 0.0, %v1809
        %v1811 = vpop.f32.mrf.mxu0
        %1812 = vmatprep.mubr.bf16.mxu0 %v1635
        %1813 = vmatmul.mubr.bf16.gmra.mxu0 %v1634
        %v1814 = vpop.f32.mrf.mxu0
        %v1815 = vadd.f32 0.0, %v1814
        %v1816 = vpop.f32.mrf.mxu0
        %v1817 = vpop.f32.mrf.mxu0
        %v1818 = vadd.f32 0.0, %v1817
        %v1819 = vpop.f32.mrf.mxu0
        %1820 = vmatprep.mubr.bf16.mxu0 %v1637
        %1821 = vmatmul.mubr.bf16.gmra.mxu0 %v1636
        %v1822 = vpop.f32.mrf.mxu0
        %v1823 = vadd.f32 0.0, %v1822
        %v1824 = vpop.f32.mrf.mxu0
        %v1825 = vpop.f32.mrf.mxu0
        %v1826 = vadd.f32 0.0, %v1825
        %v1827 = vpop.f32.mrf.mxu0
        %1828 = vmatprep.mubr.bf16.mxu0 %v1639
        %1829 = vmatmul.mubr.bf16.gmra.mxu0 %v1638
        %v1830 = vpop.f32.mrf.mxu0
        %v1831 = vadd.f32 0.0, %v1830
        %v1832 = vpop.f32.mrf.mxu0
        %v1833 = vpop.f32.mrf.mxu0
        %v1834 = vadd.f32 0.0, %v1833
        %v1835 = vpop.f32.mrf.mxu0
        %1836 = vmatprep.mubr.bf16.mxu0 %v1641
        %1837 = vmatmul.mubr.bf16.gmra.mxu0 %v1640
        %v1838 = vpop.f32.mrf.mxu0
        %v1839 = vadd.f32 0.0, %v1838
        %v1840 = vpop.f32.mrf.mxu0
        %v1841 = vpop.f32.mrf.mxu0
        %v1842 = vadd.f32 0.0, %v1841
        %v1843 = vpop.f32.mrf.mxu0
        %1844 = vmatprep.mubr.bf16.mxu0 %v1643
        %1845 = vmatmul.mubr.bf16.gmra.mxu0 %v1642
        %v1846 = vpop.f32.mrf.mxu0
        %v1847 = vadd.f32 0.0, %v1846
        %v1848 = vpop.f32.mrf.mxu0
        %v1849 = vpop.f32.mrf.mxu0
        %v1850 = vadd.f32 0.0, %v1849
        %v1851 = vpop.f32.mrf.mxu0
        %1852 = vdwg.mxu0
        %v1853 = vld [vmem:[#allocation2] sm:$0xff]
        %v1854 = vld [vmem:[#allocation2 + $0x8] sm:$0xff]
        %v1855 = vld [vmem:[#allocation2 + $0x10] sm:$0xff]
        %v1856 = vld [vmem:[#allocation2 + $0x18] sm:$0xff]
        %v1857 = vpack.c.bf16 %v1794, %v1791
        %v1858 = vpack.c.bf16 %v1802, %v1799
        %v1859 = vpack.c.bf16 %v1810, %v1807
        %v1860 = vpack.c.bf16 %v1818, %v1815
        %v1861 = vpack.c.bf16 %v1826, %v1823
        %v1862 = vpack.c.bf16 %v1834, %v1831
        %v1863 = vpack.c.bf16 %v1842, %v1839
        %v1864 = vpack.c.bf16 %v1850, %v1847
        %1865 = vmatprep.subr.bf16.mxu0 0
        %1866 = vmatpush1.bf16.msra.mxu0 %v1864
        %1867 = vmatprep.subr.bf16.mxu0 0
        %1868 = vmatpush1.bf16.msra.mxu0 %v1863
        %1869 = vmatprep.subr.bf16.mxu0 0
        %1870 = vmatpush1.bf16.msra.mxu0 %v1862
        %1871 = vmatprep.subr.bf16.mxu0 0
        %1872 = vmatpush1.bf16.msra.mxu0 %v1861
        %1873 = vmatprep.subr.bf16.mxu0 0
        %1874 = vmatpush1.bf16.msra.mxu0 %v1860
        %1875 = vmatprep.subr.bf16.mxu0 0
        %1876 = vmatpush1.bf16.msra.mxu0 %v1859
        %1877 = vmatprep.subr.bf16.mxu0 0
        %1878 = vmatpush1.bf16.msra.mxu0 %v1858
        %1879 = vmatprep.subr.bf16.mxu0 0
        %1880 = vmatpush1.bf16.msra.mxu0 %v1857
        %1881 = vmatprep.subr.bf16.mxu0 0
        %1882 = vmatpush2.bf16.msra.mxu0 0
        %1883 = vmatprep.subr.bf16.mxu0 0
        %1884 = vmatpush2.bf16.msra.mxu0 0
        %1885 = vmatprep.subr.bf16.mxu0 0
        %1886 = vmatpush2.bf16.msra.mxu0 0
        %1887 = vmatprep.subr.bf16.mxu0 0
        %1888 = vmatpush2.bf16.msra.mxu0 0
        %1889 = vmatprep.subr.bf16.mxu0 0
        %1890 = vmatpush2.bf16.msra.mxu0 0
        %1891 = vmatprep.subr.bf16.mxu0 0
        %1892 = vmatpush2.bf16.msra.mxu0 0
        %1893 = vmatprep.subr.bf16.mxu0 0
        %1894 = vmatpush2.bf16.msra.mxu0 0
        %1895 = vmatprep.subr.bf16.mxu0 0
        %1896 = vmatpush2.bf16.msra.mxu0 0
        %1897 = vmatprep.mubr.bf16.mxu0 0
        %1898 = vmatmul.mubr.bf16.gmra.mxu0 %v668
        %v1899 = vpop.f32.mrf.mxu0
        %v1900 = vadd.f32 0.0, %v1899
        %v1901 = vpop.f32.mrf.mxu0
        %v1902 = vpop.f32.mrf.mxu0
        %v1903 = vadd.f32 0.0, %v1902
        %v1904 = vpop.f32.mrf.mxu0
        %1905 = vmatprep.mubr.bf16.mxu0 0
        %1906 = vmatmul.mubr.bf16.gmra.mxu0 %v669
        %v1907 = vpop.f32.mrf.mxu0
        %v1908 = vadd.f32 0.0, %v1907
        %v1909 = vpop.f32.mrf.mxu0
        %v1910 = vpop.f32.mrf.mxu0
        %v1911 = vadd.f32 0.0, %v1910
        %v1912 = vpop.f32.mrf.mxu0
        %1913 = vdwg.mxu0
        %v1914 = vadd.f32 %v1853, %v1900
        %v1915 = vadd.f32 %v1854, %v1903
        %v1916 = vadd.f32 %v1855, %v1908
        %v1917 = vadd.f32 %v1856, %v1911
        %1918 = vst [vmem:[#allocation2] sm:$0xff] %v1914
        %1919 = vst [vmem:[#allocation2 + $0x8] sm:$0xff] %v1915
        %1920 = vst [vmem:[#allocation2 + $0x10] sm:$0xff] %v1916
        %1921 = vst [vmem:[#allocation2 + $0x18] sm:$0xff] %v1917
        %p1922 = scmp.eq.s32.totalorder %s26, 2
        // Predicated region
        $region61: #{tpu_custom_call.1} parent=55 // pred_check
          %p1923 = pneg %p1922
        $region62: #{tpu_custom_call.1} parent=55 // pred_check_branch
          %1925 = sbr.rel (%p1923) target = $region64
        $region63: #{tpu_custom_call.1} parent=55 // pred_region
          %p1926 = scmp.eq.s32.totalorder %s25, 0
          %s1927 = scalar_select %p1926, 1, 0
          %s1928 = scvt.s32.f32 %s1927
          %v1929 = vld [vmem:[#allocation2] sm:$0xff]
          %v1930 = vld [vmem:[#allocation2 + $0x8] sm:$0xff]
          %v1931 = vld [vmem:[#allocation2 + $0x10] sm:$0xff]
          %v1932 = vld [vmem:[#allocation2 + $0x18] sm:$0xff]
          %v1933 = vld [vmem:[%s7] sm:$0xf]
          %v1934 = vld [vmem:[%s8] sm:$0x1]
          %v1936 = vlaneseq
          %v1937 = vshrl.u32 %v1936, 7
          %v1938 = vsub.s32 0, %v1937
          %v1939 = vrot.slane %v1934, %v1938
          %vm1941 = vcmask 31744
          %v1943 = vsel %vm1941, %v417, 0
          %v1946 = vsel %vm1941, %v418, 0
          %v1949 = vsel %vm1941, %v419, 0
          %v1952 = vsel %vm1941, %v420, 0
          %vm1954 = vcmask 1043456
          %v1956 = vsel %vm1954, %v1933, 0
          %1958 = vmatprep.subr.mxu0 0.0
          %1959 = vmatpush1.msra.mxu0 0.0
          %1960 = vmatprep.subr.mxu0 0.0
          %1961 = vmatpush1.msra.mxu0 0.0
          %1962 = vmatprep.subr.mxu0 0.0
          %1963 = vmatpush1.msra.mxu0 0.0
          %1964 = vmatprep.subr.mxu0 0.0
          %1965 = vmatpush1.msra.mxu0 0.0
          %1966 = vmatprep.subr.mxu0 0.0
          %1967 = vmatpush1.msra.mxu0 0.0
          %1968 = vmatprep.subr.mxu0 0.0
          %1969 = vmatpush1.msra.mxu0 0.0
          %1970 = vmatprep.subr.mxu0 0.0
          %1971 = vmatpush1.msra.mxu0 0.0
          %1972 = vmatprep.subr.mxu0 0.0
          %1973 = vmatpush1.msra.mxu0 0.0
          %1974 = vmatprep.subr.mxu0 0.0
          %1975 = vmatpush1.msra.mxu0 0.0
          %1976 = vmatprep.subr.mxu0 0.0
          %1977 = vmatpush1.msra.mxu0 0.0
          %1978 = vmatprep.subr.mxu0 0.0
          %1979 = vmatpush1.msra.mxu0 0.0
          %1980 = vmatprep.subr.mxu0 0.0
          %1981 = vmatpush1.msra.mxu0 0.0
          %1982 = vmatprep.subr.mxu0 0.0
          %1983 = vmatpush1.msra.mxu0 0.0
          %1984 = vmatprep.subr.mxu0 0.0
          %1985 = vmatpush1.msra.mxu0 0.0
          %1986 = vmatprep.subr.mxu0 0.0
          %1987 = vmatpush1.msra.mxu0 0.0
          %1988 = vmatprep.subr.mxu0 0.0
          %1989 = vmatpush1.msra.mxu0 %v1956
          %1990 = vmatprep.subr.mxu0 0.0
          %1991 = vmatpush2.msra.mxu0 0.0
          %1992 = vmatprep.subr.mxu0 0.0
          %1993 = vmatpush2.msra.mxu0 0.0
          %1994 = vmatprep.subr.mxu0 0.0
          %1995 = vmatpush2.msra.mxu0 0.0
          %1996 = vmatprep.subr.mxu0 0.0
          %1997 = vmatpush2.msra.mxu0 0.0
          %1998 = vmatprep.subr.mxu0 0.0
          %1999 = vmatpush2.msra.mxu0 0.0
          %2000 = vmatprep.subr.mxu0 0.0
          %2001 = vmatpush2.msra.mxu0 0.0
          %2002 = vmatprep.subr.mxu0 0.0
          %2003 = vmatpush2.msra.mxu0 0.0
          %2004 = vmatprep.subr.mxu0 0.0
          %2005 = vmatpush2.msra.mxu0 0.0
          %2006 = vmatprep.subr.mxu0 0.0
          %2007 = vmatpush2.msra.mxu0 0.0
          %2008 = vmatprep.subr.mxu0 0.0
          %2009 = vmatpush2.msra.mxu0 0.0
          %2010 = vmatprep.subr.mxu0 0.0
          %2011 = vmatpush2.msra.mxu0 0.0
          %2012 = vmatprep.subr.mxu0 0.0
          %2013 = vmatpush2.msra.mxu0 0.0
          %2014 = vmatprep.subr.mxu0 0.0
          %2015 = vmatpush2.msra.mxu0 0.0
          %2016 = vmatprep.subr.mxu0 0.0
          %2017 = vmatpush2.msra.mxu0 0.0
          %2018 = vmatprep.subr.mxu0 0.0
          %2019 = vmatpush2.msra.mxu0 0.0
          %2020 = vmatprep.subr.mxu0 0.0
          %2021 = vmatpush2.msra.mxu0 0.0
          %2022 = vmatprep.mubr.f32.mxu0 0.0
          %2023 = vmatmul.mubr.f32.gmra.mxu0 %v1943
          %v2024 = vpop.f32.mrf.mxu0
          %v2025 = vadd.f32 %v1939, %v2024
          %v2026 = vpop.f32.mrf.mxu0
          %2027 = vmatprep.mubr.f32.mxu0 0.0
          %2028 = vmatmul.mubr.f32.gmra.mxu0 %v1946
          %v2029 = vpop.f32.mrf.mxu0
          %v2030 = vadd.f32 %v1939, %v2029
          %v2031 = vpop.f32.mrf.mxu0
          %2032 = vmatprep.mubr.f32.mxu0 0.0
          %2033 = vmatmul.mubr.f32.gmra.mxu0 %v1949
          %v2034 = vpop.f32.mrf.mxu0
          %v2035 = vadd.f32 %v1939, %v2034
          %v2036 = vpop.f32.mrf.mxu0
          %2037 = vmatprep.mubr.f32.mxu0 0.0
          %2038 = vmatmul.mubr.f32.gmra.mxu0 %v1952
          %v2039 = vpop.f32.mrf.mxu0
          %v2040 = vadd.f32 %v1939, %v2039
          %v2041 = vpop.f32.mrf.mxu0
          %2042 = vdwg.mxu0
          %v2043 = vstv %s1928
          %v2044 = vmul.f32 %v2043, %v2025
          %v2045 = vmul.f32 %v2043, %v2030
          %v2046 = vmul.f32 %v2043, %v2035
          %v2047 = vmul.f32 %v2043, %v2040
          %v2048 = vadd.f32 %v1929, %v2044
          %v2049 = vadd.f32 %v1930, %v2045
          %v2050 = vadd.f32 %v1931, %v2046
          %v2051 = vadd.f32 %v1932, %v2047
          %2052 = vst [vmem:[#allocation4] sm:$0xff] %v2048
          %2053 = vst [vmem:[#allocation4 + $0x8] sm:$0xff] %v2049
          %2054 = vst [vmem:[#allocation4 + $0x10] sm:$0xff] %v2050
          %2055 = vst [vmem:[#allocation4 + $0x18] sm:$0xff] %v2051
        $region64: #{tpu_custom_call.1} parent=55 // pred_fallthru
          _
        // Predicated region
        $region65: #{tpu_custom_call.1} parent=55 // pred_check
          %p2056 = pneg %p267
        $region66: #{tpu_custom_call.1} parent=55 // pred_check_branch
          %2058 = sbr.rel (%p2056) target = $region68
        $region67: #{tpu_custom_call.1} parent=55 // pred_region
          %s2060 = ssub.s32 512, 512
          %2061 = vsyncadd [#allocation5], %s2060
          %s2062 = smul.addr %s25, 4
          %s2063 = smul.addr %s2062, 128
          %s2064 = scalar_lea.hbm %s9, %s2063
          %s2065 = sshll.u32 [#allocation4], 4
          %s2066 = int_to_ptr.vmem [resolvable:$true] %s2065
          %2071 = dma.vmem_to_hbm [thread:$0]  %s2066, 512, %s2064, [#allocation5], 128, 128, 8
        $region68: #{tpu_custom_call.1} parent=55 // pred_fallthru
          _
        // Predicated region
        $region69: #{tpu_custom_call.1} parent=55 // pred_check
          %p2072 = pneg %p267
        $region70: #{tpu_custom_call.1} parent=55 // pred_check_branch
          %2074 = sbr.rel (%p2072) target = $region72
        $region71: #{tpu_custom_call.1} parent=55 // pred_region
          %2075 = dma.done [#allocation5], 512
        $region72: #{tpu_custom_call.1} parent=55 // pred_fallthru
          _
      $region56: #{tpu_custom_call.1} parent=5 // pred_fallthru
        _
      %p2076 = scmp.le.s32.totalorder 2, %s16
      // Predicated region
      $region73: #{tpu_custom_call.1} parent=5 // pred_check
        %p2077 = pneg %p2076
      $region74: #{tpu_custom_call.1} parent=5 // pred_check_branch
        %2079 = sbr.rel (%p2077) target = $region76
      $region75: #{tpu_custom_call.1} parent=5 // pred_region
        %s2080 = ssub.s32 %s16, 2
      $region76: #{tpu_custom_call.1} parent=5 // pred_fallthru
        _
    $region6: #{tpu_custom_call.1} parent=1 // loop_footer
      %s20 = sadd.s32 1, %s16
    $region7: #{tpu_custom_call.1} parent=1 // loop_footer_branch
      %15 = sbr.rel target = $region3
    $region8: #{tpu_custom_call.1} parent=1 // loop_exit
      _
    %2081 = vsyncpa [#allocation5], 1
    %s2082 = scalar_lea.sflag [#allocation5], 1
    %2083 = vsyncpa %s2082, 1

</llo_original>
